<compile_context>
chip_gen: v7x
topology: tpu7x:2x2x1
jax: 0.10.0
libtpu: 0.0.40
codegen_flags: <defaults>
</compile_context>

<pallas_src>
import jax
import jax.numpy as jnp
from jax.experimental import pallas as pl
from jax.experimental.pallas import tpu as pltpu

# ---------------- configuration ----------------
N_FORECASTS = 8
N_LAGS = 16
N_CHANGEPOINTS = 4
D_HIDDEN = N_LAGS + N_FORECASTS          # 24
N_SEASON_YEAR = 6
N_SEASON_WEEK = 3
N_EV_ADD = 4
N_EV_MUL = 2

BATCH = 256                              # example batch
TB = 128                                 # rows per grid step: full MXU M-tile; grid=(2,)
                                         # so both v7x TensorCores get a step.

# ---- lane-aligned activation-slab layout (lane offsets inside each row) ----
N_ADD_FEAT = N_SEASON_YEAR + N_SEASON_WEEK + N_EV_ADD      # 13
N_ADD_FLAT = N_FORECASTS * N_ADD_FEAT                      # 104
N_MUL_FLAT = N_FORECASTS * N_EV_MUL                        # 16
N_FEAT_FLAT = N_ADD_FLAT + N_MUL_FLAT                      # 120
FEAT_OFF = 0                                               # lanes   0:120 (zero-pad to 128)
FEAT_PAD = 128
MLP_OFF = FEAT_PAD                                         # lanes 128:160  [lags | covar]
MLP_W = 2 * N_LAGS                                         # 32
TIME_OFF = MLP_OFF + MLP_W                                 # lanes 160:168
SLAB_W = TIME_OFF + N_FORECASTS                            # 168

# ---- sublane-aligned weight-slab layout (row offsets in a (216, 48) slab) ----
W_COLS = 2 * D_HIDDEN                                      # 48
W1_R0, W1_R1 = 0, MLP_W                                    # rows  0:32  fused W1 (32,48)
B1_ROW = 32                                                # row  32     fused b1 (1,48)
W2_R0, W2_R1 = 40, 40 + W_COLS                             # rows 40:88  stacked W2 (48,8)
R_R0, R_R1 = 88, 88 + FEAT_PAD                             # rows 88:216 reduction R (128,16)
W_ROWS = R_R1                                              # 216


# ---------------- Pallas kernel ----------------
def timenet_kernel(slab_ref, trend_ref, wslab_ref, out_ref):
    # ---- fused AR-net + covariate-net MLP (block-diag W1, stacked W2 -> ar+cov) ----
    x = slab_ref[:, MLP_OFF:MLP_OFF + MLP_W]                              # (TB, 32)
    h = (jnp.dot(x, wslab_ref[W1_R0:W1_R1, :], preferred_element_type=jnp.float32)
         + wslab_ref[B1_ROW:B1_ROW + 1, :])
    h = jnp.maximum(h, 0.0)                                               # (TB, 48)
    ar_cov = jnp.dot(h, wslab_ref[W2_R0:W2_R1, :N_FORECASTS],
                     preferred_element_type=jnp.float32)                  # (TB, 8)

    # ---- seasonality + event effects as one block-structured matmul ----
    feats = slab_ref[:, FEAT_OFF:FEAT_OFF + FEAT_PAD]                     # (TB, 128)
    se = jnp.dot(feats, wslab_ref[R_R0:R_R1, :2 * N_FORECASTS],
                 preferred_element_type=jnp.float32)                      # (TB, 16)
    add_se = se[:, :N_FORECASTS]                                          # season + additive events
    ev_mul = se[:, N_FORECASTS:2 * N_FORECASTS]                           # multiplicative events
    # TODO(synk): optionally fuse the h@W2 and feats@R matmuls into one block-diag
    # (TB,176)@(176,24) matmul (one MXU result drain) once verified that Mosaic does
    # not insert a copy to build the concatenated operand.

    # ---- piecewise-linear trend (segmentwise + continuous) ----
    # trend_ref layout: [k0+delta0, m0, cp_0..3, d_step_0..3, gamma_0..3]
    t = slab_ref[:, TIME_OFF:TIME_OFF + N_FORECASTS]                      # (TB, 8)
    k_t = trend_ref[0]                                                    # scalar k0 + delta0
    m_t = trend_ref[1]                                                    # scalar m0
    for j in range(N_CHANGEPOINTS):                                       # tiny, unrolled
        past = (t >= trend_ref[2 + j]).astype(jnp.float32)
        k_t = k_t + past * trend_ref[2 + N_CHANGEPOINTS + j]
        m_t = m_t + past * trend_ref[2 + 2 * N_CHANGEPOINTS + j]
    trend = k_t * t + m_t                                                 # (TB, 8)

    out_ref[...] = trend + trend * ev_mul + ar_cov + add_se               # (TB, 8)


# ---------------- wrapper ----------------
def timenet_forward(inputs, params):
    f32 = jnp.float32
    time = inputs["time"]
    B = time.shape[0]
    assert B % TB == 0  # TODO(synk): add a masked/padded tail tile for ragged batches.
    num_tiles = B // TB

    # ---- lane-aligned activation slab (one wide DMA per grid step) ----
    # TODO(synk): for very large B, produce this packed layout upstream in the data
    # pipeline instead of concatenating here, to avoid an extra HBM write+read of the
    # full slab before the kernel runs.
    add_flat = jnp.concatenate(
        [inputs["syear"], inputs["sweek"], inputs["ev_add"]], axis=2
    ).reshape(B, N_ADD_FLAT)                                              # (B, 104)
    mul_flat = inputs["ev_mul"].reshape(B, N_MUL_FLAT)                    # (B, 16)
    feat_pad = jnp.zeros((B, FEAT_PAD - N_FEAT_FLAT), f32)                # (B, 8)
    slab = jnp.concatenate(
        [add_flat, mul_flat, feat_pad, inputs["lags"], inputs["covar"], time],
        axis=1).astype(f32)                                               # (B, 168)

    # ---- fuse AR-net + covariate-net weights (block-diag W1, stacked W2) ----
    w1 = jnp.zeros((MLP_W, W_COLS), f32)
    w1 = w1.at[:N_LAGS, :D_HIDDEN].set(params["ar_w1"])
    w1 = w1.at[N_LAGS:, D_HIDDEN:].set(params["cv_w1"])
    b1 = jnp.concatenate([params["ar_b1"], params["cv_b1"]])              # (48,)
    w2 = jnp.concatenate([params["ar_w2"], params["cv_w2"]], axis=0)      # (48, 8)

    # ---- fold seasonality / event reductions into one block-structured matrix ----
    p_add = jnp.concatenate([params["sp_year"], params["sp_week"], params["ep_add"]])  # (13,)
    eye_f = jnp.eye(N_FORECASTS, dtype=f32)
    r_add = jnp.kron(eye_f, p_add[:, None])                               # (104, 8)
    r_mul = jnp.kron(eye_f, params["ep_mul"][:, None])                    # (16, 8)

    # ---- pack all weight operands into one sublane-aligned slab (one DMA) ----
    wslab = jnp.zeros((W_ROWS, W_COLS), f32)
    wslab = wslab.at[W1_R0:W1_R1, :].set(w1)
    wslab = wslab.at[B1_ROW, :].set(b1)
    wslab = wslab.at[W2_R0:W2_R1, :N_FORECASTS].set(w2)
    wslab = wslab.at[R_R0:R_R0 + N_ADD_FLAT, :N_FORECASTS].set(r_add)
    wslab = wslab.at[R_R0 + N_ADD_FLAT:R_R0 + N_FEAT_FLAT,
                     N_FORECASTS:2 * N_FORECASTS].set(r_mul)

    # ---- trend scalars: [k0+delta0, m0, cp_j, d_step_j, gamma_j] (SMEM) ----
    deltas = params["trend_deltas"]
    cp = params["trend_cp"]
    d_step = deltas[1:] - deltas[:-1]
    gamma = -cp * d_step
    trend_scalars = jnp.concatenate(
        [params["trend_km"][:1] + deltas[:1], params["trend_km"][1:2],
         cp, d_step, gamma]).astype(f32)                                  # (14,)

    out = pl.pallas_call(
        timenet_kernel,
        out_shape=jax.ShapeDtypeStruct((B, N_FORECASTS), f32),
        grid=(num_tiles,),
        in_specs=[
            pl.BlockSpec((TB, SLAB_W), lambda i: (i, 0)),                 # activation slab
            pl.BlockSpec(memory_space=pltpu.MemorySpace.SMEM),            # trend scalars
            pl.BlockSpec((W_ROWS, W_COLS), lambda i: (0, 0)),             # packed weight slab
        ],
        out_specs=pl.BlockSpec((TB, N_FORECASTS), lambda i: (i, 0)),
        compiler_params=pltpu.CompilerParams(dimension_semantics=("parallel",)),
    )(slab, trend_scalars, wslab)

    return out


# ---------------- pure-JAX reference (mirrors torch forward, f32 matmuls) ----------------
def timenet_reference(inputs, params):
    hp = jax.lax.Precision.HIGHEST
    t = inputs["time"]
    cp = params["trend_cp"]
    deltas = params["trend_deltas"]
    k0, m0 = params["trend_km"][0], params["trend_km"][1]
    past = (t[:, :, None] >= cp[None, None, :]).astype(jnp.float32)
    seg = jnp.sum(past, axis=2).astype(jnp.int32)
    k_t = deltas[seg]
    gammas = -cp * (deltas[1:] - deltas[:-1])
    m_t = jnp.sum(past * gammas[None, None, :], axis=2)
    trend = (k0 + k_t) * t + (m0 + m_t)

    def mlp(x, w1, b1, w2):
        h = jnp.maximum(jnp.dot(x, w1, precision=hp) + b1[None, :], 0.0)
        return jnp.dot(h, w2, precision=hp)

    ar = mlp(inputs["lags"], params["ar_w1"], params["ar_b1"], params["ar_w2"])
    cov = mlp(inputs["covar"], params["cv_w1"], params["cv_b1"], params["cv_w2"])
    season = (jnp.sum(inputs["syear"] * params["sp_year"][None, None, :], axis=2)
              + jnp.sum(inputs["sweek"] * params["sp_week"][None, None, :], axis=2))
    ev_add = jnp.sum(inputs["ev_add"] * params["ep_add"][None, None, :], axis=2)
    ev_mul = jnp.sum(inputs["ev_mul"] * params["ep_mul"][None, None, :], axis=2)
    additive = ar + cov + season + ev_add
    return trend + trend * ev_mul + additive


# ---------------- parameter / input construction ----------------
def make_params(key):
    ks = jax.random.split(key, 12)
    return {
        "trend_km": jax.random.normal(ks[0], (2,), jnp.float32) * 0.5,          # [k0, m0]
        "trend_deltas": jax.random.normal(ks[1], (N_CHANGEPOINTS + 1,), jnp.float32) * 0.3,
        "trend_cp": (jnp.arange(1, N_CHANGEPOINTS + 1, dtype=jnp.float32)
                     / (N_CHANGEPOINTS + 1)),
        "ar_w1": jax.random.normal(ks[2], (N_LAGS, D_HIDDEN), jnp.float32) * 0.2,
        "ar_b1": jax.random.normal(ks[3], (D_HIDDEN,), jnp.float32) * 0.1,
        "ar_w2": jax.random.normal(ks[4], (D_HIDDEN, N_FORECASTS), jnp.float32) * 0.2,
        "cv_w1": jax.random.normal(ks[5], (N_LAGS, D_HIDDEN), jnp.float32) * 0.2,
        "cv_b1": jax.random.normal(ks[6], (D_HIDDEN,), jnp.float32) * 0.1,
        "cv_w2": jax.random.normal(ks[7], (D_HIDDEN, N_FORECASTS), jnp.float32) * 0.2,
        "sp_year": jax.random.normal(ks[8], (N_SEASON_YEAR,), jnp.float32) * 0.3,
        "sp_week": jax.random.normal(ks[9], (N_SEASON_WEEK,), jnp.float32) * 0.3,
        "ep_add": jax.random.normal(ks[10], (N_EV_ADD,), jnp.float32) * 0.3,
        "ep_mul": jax.random.normal(ks[11], (N_EV_MUL,), jnp.float32) * 0.3,
    }


def make_inputs(key):
    ks = jax.random.split(key, 7)
    return {
        "time": jax.random.uniform(ks[0], (BATCH, N_FORECASTS), jnp.float32),
        "lags": jax.random.normal(ks[1], (BATCH, N_LAGS), jnp.float32),
        "covar": jax.random.normal(ks[2], (BATCH, N_LAGS), jnp.float32),
        "syear": jax.random.normal(ks[3], (BATCH, N_FORECASTS, N_SEASON_YEAR), jnp.float32),
        "sweek": jax.random.normal(ks[4], (BATCH, N_FORECASTS, N_SEASON_WEEK), jnp.float32),
        "ev_add": jax.random.normal(ks[5], (BATCH, N_FORECASTS, N_EV_ADD), jnp.float32),
        "ev_mul": jax.random.normal(ks[6], (BATCH, N_FORECASTS, N_EV_MUL), jnp.float32),
    }


if __name__ == "__main__":
    root = jax.random.PRNGKey(0)
    k_params, k_inputs = jax.random.split(root)
    params = make_params(k_params)
    inputs = make_inputs(k_inputs)

    out = jax.block_until_ready(timenet_forward(inputs, params))
    ref = jax.block_until_ready(timenet_reference(inputs, params))

    assert out.shape == (BATCH, N_FORECASTS)
    assert jnp.allclose(out, ref, rtol=1e-4, atol=1e-4), "mismatch vs JAX reference"

    print("KERNEL_OK")
</pallas_src>

<mosaic_0001>
module attributes {stable_mosaic.version = 11 : i64} {
  func.func @timenet_kernel(%arg0: i32, %arg1: memref<128x168xf32, #tpu.memory_space<vmem>>, %arg2: memref<14xf32, #tpu.memory_space<smem>>, %arg3: memref<216x48xf32, #tpu.memory_space<vmem>>, %arg4: memref<128x8xf32, #tpu.memory_space<vmem>>) attributes {dimension_semantics = [#tpu.dimension_semantics<parallel>], iteration_bounds = array<i64: 2>, scalar_prefetch = 0 : i64, scratch_operands = 0 : i64, tpu.core_type = #tpu.core_type<tc>, window_params = [{transform_indices = @transform_0, window_bounds = array<i64: 128, 168>}, {transform_indices = @transform_1, window_bounds = array<i64: 14>}, {pipeline_mode = #tpu.pipeline_mode<synchronous>, transform_indices = @transform_2, window_bounds = array<i64: 216, 48>}, {transform_indices = @transform_3, window_bounds = array<i64: 128, 8>}]} {
    %c0 = arith.constant 0 : index
    %c128 = arith.constant 128 : index
    %0 = vector.load %arg1[%c0, %c128] : memref<128x168xf32, #tpu.memory_space<vmem>>, vector<128x32xf32>
    %c0_0 = arith.constant 0 : index
    %c0_1 = arith.constant 0 : index
    %1 = vector.load %arg3[%c0_0, %c0_1] : memref<216x48xf32, #tpu.memory_space<vmem>>, vector<32x48xf32>
    %cst = arith.constant dense<0.000000e+00> : vector<128x48xf32>
    %2 = tpu.matmul %0, %1, %cst {dimension_numbers = #tpu.dot_dimension_numbers<[1], [0], [0], [1], [0, 0, 1, 1], [], []>} : vector<128x32xf32>, vector<32x48xf32>, vector<128x48xf32> -> vector<128x48xf32>
    %c32 = arith.constant 32 : index
    %c0_2 = arith.constant 0 : index
    %3 = vector.load %arg3[%c32, %c0_2] : memref<216x48xf32, #tpu.memory_space<vmem>>, vector<1x48xf32>
    %4 = vector.broadcast %3 : vector<1x48xf32> to vector<128x48xf32>
    %5 = arith.addf %2, %4 : vector<128x48xf32>
    %cst_3 = arith.constant 0.000000e+00 : f32
    %6 = vector.broadcast %cst_3 : f32 to vector<128x48xf32>
    %7 = arith.maximumf %5, %6 : vector<128x48xf32>
    %c40 = arith.constant 40 : index
    %c0_4 = arith.constant 0 : index
    %8 = vector.load %arg3[%c40, %c0_4] : memref<216x48xf32, #tpu.memory_space<vmem>>, vector<48x8xf32>
    %cst_5 = arith.constant dense<0.000000e+00> : vector<128x8xf32>
    %9 = tpu.matmul %7, %8, %cst_5 {dimension_numbers = #tpu.dot_dimension_numbers<[1], [0], [0], [1], [0, 0, 1, 1], [], []>} : vector<128x48xf32>, vector<48x8xf32>, vector<128x8xf32> -> vector<128x8xf32>
    %c0_6 = arith.constant 0 : index
    %c0_7 = arith.constant 0 : index
    %10 = vector.load %arg1[%c0_6, %c0_7] : memref<128x168xf32, #tpu.memory_space<vmem>>, vector<128x128xf32>
    %c88 = arith.constant 88 : index
    %c0_8 = arith.constant 0 : index
    %11 = vector.load %arg3[%c88, %c0_8] : memref<216x48xf32, #tpu.memory_space<vmem>>, vector<128x16xf32>
    %cst_9 = arith.constant dense<0.000000e+00> : vector<128x16xf32>
    %12 = tpu.matmul %10, %11, %cst_9 {dimension_numbers = #tpu.dot_dimension_numbers<[1], [0], [0], [1], [0, 0, 1, 1], [], []>} : vector<128x128xf32>, vector<128x16xf32>, vector<128x16xf32> -> vector<128x16xf32>
    %13 = vector.extract_strided_slice %12 {offsets = [0, 0], sizes = [128, 8], strides = [1, 1]} : vector<128x16xf32> to vector<128x8xf32>
    %14 = vector.extract_strided_slice %12 {offsets = [0, 8], sizes = [128, 8], strides = [1, 1]} : vector<128x16xf32> to vector<128x8xf32>
    %c0_10 = arith.constant 0 : index
    %c160 = arith.constant 160 : index
    %15 = vector.load %arg1[%c0_10, %c160] : memref<128x168xf32, #tpu.memory_space<vmem>>, vector<128x8xf32>
    %c0_11 = arith.constant 0 : index
    %16 = memref.load %arg2[%c0_11] : memref<14xf32, #tpu.memory_space<smem>>
    %c1 = arith.constant 1 : index
    %17 = memref.load %arg2[%c1] : memref<14xf32, #tpu.memory_space<smem>>
    %c2 = arith.constant 2 : index
    %18 = memref.load %arg2[%c2] : memref<14xf32, #tpu.memory_space<smem>>
    %19 = vector.broadcast %18 : f32 to vector<128x8xf32>
    %20 = arith.cmpf oge, %15, %19 : vector<128x8xf32>
    %21 = arith.extui %20 : vector<128x8xi1> to vector<128x8xi32>
    %22 = arith.sitofp %21 : vector<128x8xi32> to vector<128x8xf32>
    %c6 = arith.constant 6 : index
    %23 = memref.load %arg2[%c6] : memref<14xf32, #tpu.memory_space<smem>>
    %24 = vector.broadcast %23 : f32 to vector<128x8xf32>
    %25 = arith.mulf %22, %24 : vector<128x8xf32>
    %26 = vector.broadcast %16 : f32 to vector<128x8xf32>
    %27 = arith.addf %26, %25 : vector<128x8xf32>
    %c10 = arith.constant 10 : index
    %28 = memref.load %arg2[%c10] : memref<14xf32, #tpu.memory_space<smem>>
    %29 = vector.broadcast %28 : f32 to vector<128x8xf32>
    %30 = arith.mulf %22, %29 : vector<128x8xf32>
    %31 = vector.broadcast %17 : f32 to vector<128x8xf32>
    %32 = arith.addf %31, %30 : vector<128x8xf32>
    %c3 = arith.constant 3 : index
    %33 = memref.load %arg2[%c3] : memref<14xf32, #tpu.memory_space<smem>>
    %34 = vector.broadcast %33 : f32 to vector<128x8xf32>
    %35 = arith.cmpf oge, %15, %34 : vector<128x8xf32>
    %36 = arith.extui %35 : vector<128x8xi1> to vector<128x8xi32>
    %37 = arith.sitofp %36 : vector<128x8xi32> to vector<128x8xf32>
    %c7 = arith.constant 7 : index
    %38 = memref.load %arg2[%c7] : memref<14xf32, #tpu.memory_space<smem>>
    %39 = vector.broadcast %38 : f32 to vector<128x8xf32>
    %40 = arith.mulf %37, %39 : vector<128x8xf32>
    %41 = arith.addf %27, %40 : vector<128x8xf32>
    %c11 = arith.constant 11 : index
    %42 = memref.load %arg2[%c11] : memref<14xf32, #tpu.memory_space<smem>>
    %43 = vector.broadcast %42 : f32 to vector<128x8xf32>
    %44 = arith.mulf %37, %43 : vector<128x8xf32>
    %45 = arith.addf %32, %44 : vector<128x8xf32>
    %c4 = arith.constant 4 : index
    %46 = memref.load %arg2[%c4] : memref<14xf32, #tpu.memory_space<smem>>
    %47 = vector.broadcast %46 : f32 to vector<128x8xf32>
    %48 = arith.cmpf oge, %15, %47 : vector<128x8xf32>
    %49 = arith.extui %48 : vector<128x8xi1> to vector<128x8xi32>
    %50 = arith.sitofp %49 : vector<128x8xi32> to vector<128x8xf32>
    %c8 = arith.constant 8 : index
    %51 = memref.load %arg2[%c8] : memref<14xf32, #tpu.memory_space<smem>>
    %52 = vector.broadcast %51 : f32 to vector<128x8xf32>
    %53 = arith.mulf %50, %52 : vector<128x8xf32>
    %54 = arith.addf %41, %53 : vector<128x8xf32>
    %c12 = arith.constant 12 : index
    %55 = memref.load %arg2[%c12] : memref<14xf32, #tpu.memory_space<smem>>
    %56 = vector.broadcast %55 : f32 to vector<128x8xf32>
    %57 = arith.mulf %50, %56 : vector<128x8xf32>
    %58 = arith.addf %45, %57 : vector<128x8xf32>
    %c5 = arith.constant 5 : index
    %59 = memref.load %arg2[%c5] : memref<14xf32, #tpu.memory_space<smem>>
    %60 = vector.broadcast %59 : f32 to vector<128x8xf32>
    %61 = arith.cmpf oge, %15, %60 : vector<128x8xf32>
    %62 = arith.extui %61 : vector<128x8xi1> to vector<128x8xi32>
    %63 = arith.sitofp %62 : vector<128x8xi32> to vector<128x8xf32>
    %c9 = arith.constant 9 : index
    %64 = memref.load %arg2[%c9] : memref<14xf32, #tpu.memory_space<smem>>
    %65 = vector.broadcast %64 : f32 to vector<128x8xf32>
    %66 = arith.mulf %63, %65 : vector<128x8xf32>
    %67 = arith.addf %54, %66 : vector<128x8xf32>
    %c13 = arith.constant 13 : index
    %68 = memref.load %arg2[%c13] : memref<14xf32, #tpu.memory_space<smem>>
    %69 = vector.broadcast %68 : f32 to vector<128x8xf32>
    %70 = arith.mulf %63, %69 : vector<128x8xf32>
    %71 = arith.addf %58, %70 : vector<128x8xf32>
    %72 = arith.mulf %67, %15 : vector<128x8xf32>
    %73 = arith.addf %72, %71 : vector<128x8xf32>
    %74 = arith.mulf %73, %14 : vector<128x8xf32>
    %75 = arith.addf %73, %74 : vector<128x8xf32>
    %76 = arith.addf %75, %9 : vector<128x8xf32>
    %77 = arith.addf %76, %13 : vector<128x8xf32>
    %c0_12 = arith.constant 0 : index
    %c0_13 = arith.constant 0 : index
    %78 = vector.load %arg4[%c0_12, %c0_13] : memref<128x8xf32, #tpu.memory_space<vmem>>, vector<128x8xf32>
    tpu.vector_store %arg4[%c0_12, %c0_13], %77 {strides = array<i32>} : memref<128x8xf32, #tpu.memory_space<vmem>>, vector<128x8xf32>,
    return
  }
  func.func @transform_0(%arg0: i32) -> (i32, i32) {
    %c0_i32 = arith.constant 0 : i32
    %c0_i32_0 = arith.constant 0 : i32
    return %arg0, %c0_i32 : i32, i32
  }
  func.func @transform_1(%arg0: i32) -> i32 {
    %c0_i32 = arith.constant 0 : i32
    %c0_i32_0 = arith.constant 0 : i32
    return %c0_i32 : i32
  }
  func.func @transform_2(%arg0: i32) -> (i32, i32) {
    %c0_i32 = arith.constant 0 : i32
    %c0_i32_0 = arith.constant 0 : i32
    %c0_i32_1 = arith.constant 0 : i32
    return %c0_i32, %c0_i32_0 : i32, i32
  }
  func.func @transform_3(%arg0: i32) -> (i32, i32) {
    %c0_i32 = arith.constant 0 : i32
    %c0_i32_0 = arith.constant 0 : i32
    return %arg0, %c0_i32 : i32, i32
  }
}

</mosaic_0001>

<llo_original>
// kernel: tpu_custom_call.1
$region0: #{tpu_custom_call.1}
  #allocation0 [shape = 'u32[]', space=smem, size = 0x4, offset = 0x4, fixed_abs, tag = 'smem constant byte address 0x4 - core index']
  #allocation1 [shape = 'u32[144,128]{1,0:T(1,128)}', space=vmem, size = 0x12000, scoped, tag = 'internal scratch']
  %s0 = inlined_call_operand.vmem [shape: f32[256,168], index: 0, kind: input, shape index: {}]
  %s1 = inlined_call_operand.vmem [shape: f32[14], index: 1, kind: input, shape index: {}]
  %s2 = inlined_call_operand.vmem [shape: f32[216,48], index: 2, kind: input, shape index: {}]
  %s3 = inlined_call_operand.vmem [shape: f32[256,8], index: 3, kind: output, shape index: {}]
  %s4 = sld [smem:[#allocation0]]
  $region49: #{tpu_custom_call.1} parent=0
    _
  %s6 = ssub.s32 1, %s4
  %s7 = scalar_select 0, %s6, %s4
  $region1: #{tpu_custom_call.1} parent=0
    #allocation2 [shape = 'u8[512]{0}', space=smem, size = 0x200, scoped, tag = 'input window, operand 1, single buffered']
    #allocation3 [shape = 's32[2]{0}', space=sflag, size = 0x8, scoped, tag = 'scoped memory for tpu_custom_call.1']
    %8 = vsyncpa [#allocation3], 0
    loop: start=0, step=1, limit=4
    $region2: #{tpu_custom_call.1} parent=1 // loop_pre_header
      _
    $region3: #{tpu_custom_call.1} parent=1 // loop_header
      %s10 = sphi 0, %s14
      %p11 = scmp.ge.s32.totalorder %s10, 4
      %s20 = sphi 0, %s22
      %s23 = sphi 0, %s20
      %s24 = sphi 0, %s23
      %s40 = sphi 0, %s24
      %s44 = sphi 0, %s44
      %s46 = sphi 0, %s44
      %s47 = sphi 0, %s46
      %s61 = sphi 0, %s47
      %s65 = sphi 0, %s65
      %s67 = sphi 0, %s65
      %s68 = sphi 0, %s67
      %s82 = sphi 0, %s68
      %s88 = sphi 0, %s90
      %s91 = sphi 0, %s88
      %s92 = sphi 0, %s91
      %s108 = sphi 0, %s92
    $region4: #{tpu_custom_call.1} parent=1 // loop_header_branch
      %13 = sbr.rel (%p11) target = $region8
    $region5: #{tpu_custom_call.1} parent=1 // loop_body
      %s15 = ssub.s32 %s10, 1
      %s16 = ssub.s32 %s10, 2
      %s17 = sadd.s32 %s10, 1
      %s18 = ssub.s32 %s10, %s17
      %p19 = scmp.eq.s32.totalorder %s18, 0
      %s21 = sadd.s32 %s20, 1
      %s22 = scalar_select %p19, %s20, %s21
      %p25 = pneg %p19
      %p26 = scmp.eq.s32.totalorder %s10, 1
      %p27 = por %p25, %p26
      %p28 = scmp.ne.s32.totalorder %s20, %s23
      %p29 = scmp.eq.s32.totalorder %s10, 0
      %p30 = por %p28, %p29
      %p31 = scmp.ne.s32.totalorder %s20, %s23
      %p32 = scmp.eq.s32.totalorder %s15, 1
      %p33 = por %p31, %p32
      %p34 = scmp.ne.s32.totalorder %s23, %s24
      %p35 = scmp.eq.s32.totalorder %s15, 0
      %p36 = por %p34, %p35
      %p37 = scmp.ne.s32.totalorder %s23, %s24
      %p38 = scmp.eq.s32.totalorder %s16, 1
      %p39 = por %p37, %p38
      %p41 = scmp.ne.s32.totalorder %s24, %s40
      %p42 = scmp.eq.s32.totalorder %s16, 0
      %p43 = por %p41, %p42
      %s45 = sadd.s32 %s44, 1
      %p48 = scmp.eq.s32.totalorder %s10, 1
      %p49 = scmp.ne.s32.totalorder %s44, %s46
      %p50 = scmp.eq.s32.totalorder %s10, 0
      %p51 = por %p49, %p50
      %p52 = scmp.ne.s32.totalorder %s44, %s46
      %p53 = scmp.eq.s32.totalorder %s15, 1
      %p54 = por %p52, %p53
      %p55 = scmp.ne.s32.totalorder %s46, %s47
      %p56 = scmp.eq.s32.totalorder %s15, 0
      %p57 = por %p55, %p56
      %p58 = scmp.ne.s32.totalorder %s46, %s47
      %p59 = scmp.eq.s32.totalorder %s16, 1
      %p60 = por %p58, %p59
      %p62 = scmp.ne.s32.totalorder %s47, %s61
      %p63 = scmp.eq.s32.totalorder %s16, 0
      %p64 = por %p62, %p63
      %s66 = sadd.s32 %s65, 1
      %p69 = scmp.eq.s32.totalorder %s10, 1
      %p70 = scmp.ne.s32.totalorder %s65, %s67
      %p71 = scmp.eq.s32.totalorder %s10, 0
      %p72 = por %p70, %p71
      %p73 = scmp.ne.s32.totalorder %s65, %s67
      %p74 = scmp.eq.s32.totalorder %s15, 1
      %p75 = por %p73, %p74
      %p76 = scmp.ne.s32.totalorder %s67, %s68
      %p77 = scmp.eq.s32.totalorder %s15, 0
      %p78 = por %p76, %p77
      %p79 = scmp.ne.s32.totalorder %s67, %s68
      %p80 = scmp.eq.s32.totalorder %s16, 1
      %p81 = por %p79, %p80
      %p83 = scmp.ne.s32.totalorder %s68, %s82
      %p84 = scmp.eq.s32.totalorder %s16, 0
      %p85 = por %p83, %p84
      %s86 = ssub.s32 %s10, %s17
      %p87 = scmp.eq.s32.totalorder %s86, 0
      %s89 = sadd.s32 %s88, 1
      %s90 = scalar_select %p87, %s88, %s89
      %p93 = pneg %p87
      %p94 = scmp.eq.s32.totalorder %s10, 1
      %p95 = por %p93, %p94
      %p96 = scmp.ne.s32.totalorder %s88, %s91
      %p97 = scmp.eq.s32.totalorder %s10, 0
      %p98 = por %p96, %p97
      %p99 = scmp.ne.s32.totalorder %s88, %s91
      %p100 = scmp.eq.s32.totalorder %s15, 1
      %p101 = por %p99, %p100
      %p102 = scmp.ne.s32.totalorder %s91, %s92
      %p103 = scmp.eq.s32.totalorder %s15, 0
      %p104 = por %p102, %p103
      %p105 = scmp.ne.s32.totalorder %s91, %s92
      %p106 = scmp.eq.s32.totalorder %s16, 1
      %p107 = por %p105, %p106
      %p109 = scmp.ne.s32.totalorder %s92, %s108
      %p110 = scmp.eq.s32.totalorder %s16, 0
      %p111 = por %p109, %p110
      %p112 = scmp.le.s32.totalorder 1, %s10
      %p113 = scmp.lt.s32.totalorder %s10, 3
      %p114 = pnand %p112, %p113
      %p115 = pneg %p114
      // Predicated region
      $region9: #{tpu_custom_call.1} parent=5 // pred_check
        _
      $region10: #{tpu_custom_call.1} parent=5 // pred_check_branch
        %117 = sbr.rel (%p114) target = $region12
      $region11: #{tpu_custom_call.1} parent=5 // pred_region
        %s118 = ssub.s32 %s10, 1
        // Predicated region
        $region13: #{tpu_custom_call.1} parent=11 // pred_check
          %p119 = pneg %p57
        $region14: #{tpu_custom_call.1} parent=11 // pred_check_branch
          %121 = sbr.rel (%p119) target = $region16
        $region15: #{tpu_custom_call.1} parent=11 // pred_region
          %s123 = ssub.s32 16, 16
          %124 = vsyncadd [#allocation3], %s123
          %s126 = sshll.u32 %s1, 4
          %s127 = int_to_ptr.vmem [resolvable:$true] %s126
          %129 = dma.vmem_to_smem %s127, 16, [#allocation2], [#allocation3]
        $region16: #{tpu_custom_call.1} parent=11 // pred_fallthru
          _
        // Predicated region
        $region17: #{tpu_custom_call.1} parent=11 // pred_check
          %p130 = pneg %p78
        $region18: #{tpu_custom_call.1} parent=11 // pred_check_branch
          %132 = sbr.rel (%p130) target = $region20
        $region19: #{tpu_custom_call.1} parent=11 // pred_region
          _
        $region20: #{tpu_custom_call.1} parent=11 // pred_fallthru
          _
      $region12: #{tpu_custom_call.1} parent=5 // pred_fallthru
        _
      %p133 = scmp.lt.s32.totalorder %s10, 2
      // Predicated region
      $region21: #{tpu_custom_call.1} parent=5 // pred_check
        %p134 = pneg %p133
      $region22: #{tpu_custom_call.1} parent=5 // pred_check_branch
        %136 = sbr.rel (%p134) target = $region24
      $region23: #{tpu_custom_call.1} parent=5 // pred_region
        // Predicated region
        $region25: #{tpu_custom_call.1} parent=23 // pred_check
          %p137 = pneg %p30
        $region26: #{tpu_custom_call.1} parent=23 // pred_check_branch
          %139 = sbr.rel (%p137) target = $region28
        $region27: #{tpu_custom_call.1} parent=23 // pred_region
          %s140 = smul.u32 16, %s10
          %p141 = scmp.lt.s32.totalorder %s140, 31
          %s142 = scalar_select %p141, %s140, 31
          %s143 = smul.addr %s142, 2
          %s144 = smul.addr %s143, 8
          %s145 = scalar_lea.vmem %s0, %s144
          %s146 = smul.u32 16, %s10
        $region28: #{tpu_custom_call.1} parent=23 // pred_fallthru
          _
      $region24: #{tpu_custom_call.1} parent=5 // pred_fallthru
        _
      %p147 = scmp.le.s32.totalorder 1, %s10
      %p148 = scmp.lt.s32.totalorder %s10, 3
      %p149 = pnand %p147, %p148
      %p150 = pneg %p149
      // Predicated region
      $region29: #{tpu_custom_call.1} parent=5 // pred_check
        _
      $region30: #{tpu_custom_call.1} parent=5 // pred_check_branch
        %152 = sbr.rel (%p149) target = $region32
      $region31: #{tpu_custom_call.1} parent=5 // pred_region
        %s153 = ssub.s32 %s10, 1
        // Predicated region
        $region33: #{tpu_custom_call.1} parent=31 // pred_check
          %p154 = pneg %p57
        $region34: #{tpu_custom_call.1} parent=31 // pred_check_branch
          %156 = sbr.rel (%p154) target = $region36
        $region35: #{tpu_custom_call.1} parent=31 // pred_region
          %157 = dma.done [#allocation3], 16
        $region36: #{tpu_custom_call.1} parent=31 // pred_fallthru
          _
        %158 = sfence
        %s159 = smul.u32 16, %s15
        %p160 = scmp.lt.s32.totalorder %s159, 31
        %s161 = scalar_select %p160, %s159, 31
        %s162 = smul.addr %s161, 2
        %s163 = smul.addr %s162, 8
        %s164 = scalar_lea.vmem %s0, %s163
        %p165 = pneg %p36
        %p166 = pneg %p33
        %p167 = pneg %p57
        %p168 = pneg %p54
        %p169 = pneg %p78
        %p170 = pneg %p75
        %p171 = pneg %p104
        %p172 = pneg %p101
        %s173 = smul.u32 16, %s15
        %p174 = scmp.lt.s32.totalorder %s173, 31
        %s175 = scalar_select %p174, %s173, 31
        %s176 = smul.addr %s175, 8
        %s177 = scalar_lea.vmem %s3, %s176
        %s178 = smul.u32 16, %s15
        %p179 = scmp.lt.s32.totalorder %s178, 31
        %s180 = scalar_select %p179, %s178, 31
        %s181 = smul.addr %s180, 2
        %s182 = smul.addr %s181, 8
        %s183 = scalar_lea.vmem %s0, %s182
        %s184 = smul.u32 16, %s15
        %s185 = smul.u32 16, %s15
        %p186 = scmp.lt.s32.totalorder %s185, 31
        %s187 = scalar_select %p186, %s185, 31
        %s188 = smul.addr %s187, 8
        %s189 = scalar_lea.vmem %s3, %s188
        %s190 = smul.u32 16, %s15
        %v191 = vld [vmem:[%s183 + $0x8] sm:$0xff]
        %v192 = vld [vmem:[%s183 + $0x18] sm:$0xff]
        %v193 = vld [vmem:[%s183 + $0x28] sm:$0xff]
        %v194 = vld [vmem:[%s183 + $0x38] sm:$0xff]
        %v195 = vld [vmem:[%s183 + $0x48] sm:$0xff]
        %v196 = vld [vmem:[%s183 + $0x58] sm:$0xff]
        %v197 = vld [vmem:[%s183 + $0x68] sm:$0xff]
        %v198 = vld [vmem:[%s183 + $0x78] sm:$0xff]
        %v199 = vld [vmem:[%s183 + $0x88] sm:$0xff]
        %v200 = vld [vmem:[%s183 + $0x98] sm:$0xff]
        %v201 = vld [vmem:[%s183 + $0xa8] sm:$0xff]
        %v202 = vld [vmem:[%s183 + $0xb8] sm:$0xff]
        %v203 = vld [vmem:[%s183 + $0xc8] sm:$0xff]
        %v204 = vld [vmem:[%s183 + $0xd8] sm:$0xff]
        %v205 = vld [vmem:[%s183 + $0xe8] sm:$0xff]
        %v206 = vld [vmem:[%s183 + $0xf8] sm:$0xff]
        %v207 = vld [vmem:[%s2] sm:$0xff]
        %v208 = vld [vmem:[%s2 + $0x8] sm:$0xff]
        %v209 = vld [vmem:[%s2 + $0x10] sm:$0xff]
        %v210 = vld [vmem:[%s2 + $0x18] sm:$0xff]
        %v211 = vld [vmem:[%s2 + $0x20] sm:$0x1]
        %v212 = vlaneseq
        %v213 = vshrl.u32 %v212, 7
        %v214 = vsub.s32 0, %v213
        %v215 = vrot.slane %v211, %v214
        %vm216 = vcmask 261120
        %v218 = vsel %vm216, %v191, 0
        %v221 = vsel %vm216, %v192, 0
        %v224 = vsel %vm216, %v193, 0
        %v227 = vsel %vm216, %v194, 0
        %v230 = vsel %vm216, %v195, 0
        %v233 = vsel %vm216, %v196, 0
        %v236 = vsel %vm216, %v197, 0
        %v239 = vsel %vm216, %v198, 0
        %v242 = vsel %vm216, %v199, 0
        %v245 = vsel %vm216, %v200, 0
        %v248 = vsel %vm216, %v201, 0
        %v251 = vsel %vm216, %v202, 0
        %v254 = vsel %vm216, %v203, 0
        %v257 = vsel %vm216, %v204, 0
        %v260 = vsel %vm216, %v205, 0
        %v263 = vsel %vm216, %v206, 0
        %265 = vmatprep.subr.mxu0 0.0
        %266 = vmatpush1.msra.mxu0 %v207
        %267 = vmatprep.subr.mxu0 0.0
        %268 = vmatpush1.msra.mxu0 %v208
        %269 = vmatprep.subr.mxu0 0.0
        %270 = vmatpush1.msra.mxu0 %v209
        %271 = vmatprep.subr.mxu0 0.0
        %272 = vmatpush1.msra.mxu0 %v210
        %273 = vmatprep.subr.mxu0 0.0
        %274 = vmatpush1.msra.mxu0 0.0
        %275 = vmatprep.subr.mxu0 0.0
        %276 = vmatpush1.msra.mxu0 0.0
        %277 = vmatprep.subr.mxu0 0.0
        %278 = vmatpush1.msra.mxu0 0.0
        %279 = vmatprep.subr.mxu0 0.0
        %280 = vmatpush1.msra.mxu0 0.0
        %281 = vmatprep.subr.mxu0 0.0
        %282 = vmatpush1.msra.mxu0 0.0
        %283 = vmatprep.subr.mxu0 0.0
        %284 = vmatpush1.msra.mxu0 0.0
        %285 = vmatprep.subr.mxu0 0.0
        %286 = vmatpush1.msra.mxu0 0.0
        %287 = vmatprep.subr.mxu0 0.0
        %288 = vmatpush1.msra.mxu0 0.0
        %289 = vmatprep.subr.mxu0 0.0
        %290 = vmatpush1.msra.mxu0 0.0
        %291 = vmatprep.subr.mxu0 0.0
        %292 = vmatpush1.msra.mxu0 0.0
        %293 = vmatprep.subr.mxu0 0.0
        %294 = vmatpush1.msra.mxu0 0.0
        %295 = vmatprep.subr.mxu0 0.0
        %296 = vmatpush1.msra.mxu0 0.0
        %297 = vmatprep.subr.mxu0 0.0
        %298 = vmatpush1.msra.mxu0 0.0
        %299 = vmatprep.subr.mxu0 0.0
        %300 = vmatpush1.msra.mxu0 0.0
        %301 = vmatprep.subr.mxu0 0.0
        %302 = vmatpush1.msra.mxu0 0.0
        %303 = vmatprep.subr.mxu0 0.0
        %304 = vmatpush1.msra.mxu0 0.0
        %305 = vmatprep.subr.mxu0 0.0
        %306 = vmatpush1.msra.mxu0 0.0
        %307 = vmatprep.subr.mxu0 0.0
        %308 = vmatpush1.msra.mxu0 0.0
        %309 = vmatprep.subr.mxu0 0.0
        %310 = vmatpush1.msra.mxu0 0.0
        %311 = vmatprep.subr.mxu0 0.0
        %312 = vmatpush1.msra.mxu0 0.0
        %313 = vmatprep.subr.mxu0 0.0
        %314 = vmatpush1.msra.mxu0 0.0
        %315 = vmatprep.subr.mxu0 0.0
        %316 = vmatpush1.msra.mxu0 0.0
        %317 = vmatprep.subr.mxu0 0.0
        %318 = vmatpush1.msra.mxu0 0.0
        %319 = vmatprep.subr.mxu0 0.0
        %320 = vmatpush1.msra.mxu0 0.0
        %321 = vmatprep.subr.mxu0 0.0
        %322 = vmatpush1.msra.mxu0 0.0
        %323 = vmatprep.subr.mxu0 0.0
        %324 = vmatpush1.msra.mxu0 0.0
        %325 = vmatprep.subr.mxu0 0.0
        %326 = vmatpush1.msra.mxu0 0.0
        %327 = vmatprep.subr.mxu0 0.0
        %328 = vmatpush1.msra.mxu0 0.0
        %329 = vmatprep.mubr.f32.mxu0 0.0
        %330 = vmatmul.mubr.f32.gmra.mrb[0].mxu0 %v218
        %v331 = vpop.f32.mrb[0].mxu0
        %v332 = vadd.f32 %v215, %v331
        %v333 = vpop.f32.mrb[0].mxu0
        %334 = vmatprep.mubr.f32.mxu0 0.0
        %335 = vmatmul.mubr.f32.gmra.mrb[0].mxu0 %v221
        %v336 = vpop.f32.mrb[0].mxu0
        %v337 = vadd.f32 %v215, %v336
        %v338 = vpop.f32.mrb[0].mxu0
        %339 = vmatprep.mubr.f32.mxu0 0.0
        %340 = vmatmul.mubr.f32.gmra.mrb[0].mxu0 %v224
        %v341 = vpop.f32.mrb[0].mxu0
        %v342 = vadd.f32 %v215, %v341
        %v343 = vpop.f32.mrb[0].mxu0
        %344 = vmatprep.mubr.f32.mxu0 0.0
        %345 = vmatmul.mubr.f32.gmra.mrb[0].mxu0 %v227
        %v346 = vpop.f32.mrb[0].mxu0
        %v347 = vadd.f32 %v215, %v346
        %v348 = vpop.f32.mrb[0].mxu0
        %349 = vmatprep.mubr.f32.mxu0 0.0
        %350 = vmatmul.mubr.f32.gmra.mrb[0].mxu0 %v230
        %v351 = vpop.f32.mrb[0].mxu0
        %v352 = vadd.f32 %v215, %v351
        %v353 = vpop.f32.mrb[0].mxu0
        %354 = vmatprep.mubr.f32.mxu0 0.0
        %355 = vmatmul.mubr.f32.gmra.mrb[0].mxu0 %v233
        %v356 = vpop.f32.mrb[0].mxu0
        %v357 = vadd.f32 %v215, %v356
        %v358 = vpop.f32.mrb[0].mxu0
        %359 = vmatprep.mubr.f32.mxu0 0.0
        %360 = vmatmul.mubr.f32.gmra.mrb[0].mxu0 %v236
        %v361 = vpop.f32.mrb[0].mxu0
        %v362 = vadd.f32 %v215, %v361
        %v363 = vpop.f32.mrb[0].mxu0
        %364 = vmatprep.mubr.f32.mxu0 0.0
        %365 = vmatmul.mubr.f32.gmra.mrb[0].mxu0 %v239
        %v366 = vpop.f32.mrb[0].mxu0
        %v367 = vadd.f32 %v215, %v366
        %v368 = vpop.f32.mrb[0].mxu0
        %369 = vmatprep.mubr.f32.mxu0 0.0
        %370 = vmatmul.mubr.f32.gmra.mrb[0].mxu0 %v242
        %v371 = vpop.f32.mrb[0].mxu0
        %v372 = vadd.f32 %v215, %v371
        %v373 = vpop.f32.mrb[0].mxu0
        %374 = vmatprep.mubr.f32.mxu0 0.0
        %375 = vmatmul.mubr.f32.gmra.mrb[0].mxu0 %v245
        %v376 = vpop.f32.mrb[0].mxu0
        %v377 = vadd.f32 %v215, %v376
        %v378 = vpop.f32.mrb[0].mxu0
        %379 = vmatprep.mubr.f32.mxu0 0.0
        %380 = vmatmul.mubr.f32.gmra.mrb[0].mxu0 %v248
        %v381 = vpop.f32.mrb[0].mxu0
        %v382 = vadd.f32 %v215, %v381
        %v383 = vpop.f32.mrb[0].mxu0
        %384 = vmatprep.mubr.f32.mxu0 0.0
        %385 = vmatmul.mubr.f32.gmra.mrb[0].mxu0 %v251
        %v386 = vpop.f32.mrb[0].mxu0
        %v387 = vadd.f32 %v215, %v386
        %v388 = vpop.f32.mrb[0].mxu0
        %389 = vmatprep.mubr.f32.mxu0 0.0
        %390 = vmatmul.mubr.f32.gmra.mrb[0].mxu0 %v254
        %v391 = vpop.f32.mrb[0].mxu0
        %v392 = vadd.f32 %v215, %v391
        %v393 = vpop.f32.mrb[0].mxu0
        %394 = vmatprep.mubr.f32.mxu0 0.0
        %395 = vmatmul.mubr.f32.gmra.mrb[0].mxu0 %v257
        %v396 = vpop.f32.mrb[0].mxu0
        %v397 = vadd.f32 %v215, %v396
        %v398 = vpop.f32.mrb[0].mxu0
        %399 = vmatprep.mubr.f32.mxu0 0.0
        %400 = vmatmul.mubr.f32.gmra.mrb[0].mxu0 %v260
        %v401 = vpop.f32.mrb[0].mxu0
        %v402 = vadd.f32 %v215, %v401
        %v403 = vpop.f32.mrb[0].mxu0
        %404 = vmatprep.mubr.f32.mxu0 0.0
        %405 = vmatmul.mubr.f32.gmra.mrb[0].mxu0 %v263
        %v406 = vpop.f32.mrb[0].mxu0
        %v407 = vadd.f32 %v215, %v406
        %v408 = vpop.f32.mrb[0].mxu0
        %409 = vdwg.mxu0
        %v410 = vmax.f32 %v332, 0.0
        %v411 = vmax.f32 %v337, 0.0
        %v412 = vmax.f32 %v342, 0.0
        %v413 = vmax.f32 %v347, 0.0
        %v414 = vmax.f32 %v352, 0.0
        %v415 = vmax.f32 %v357, 0.0
        %v416 = vmax.f32 %v362, 0.0
        %v417 = vmax.f32 %v367, 0.0
        %v418 = vmax.f32 %v372, 0.0
        %v419 = vmax.f32 %v377, 0.0
        %v420 = vmax.f32 %v382, 0.0
        %v421 = vmax.f32 %v387, 0.0
        %v422 = vmax.f32 %v392, 0.0
        %v423 = vmax.f32 %v397, 0.0
        %v424 = vmax.f32 %v402, 0.0
        %v425 = vmax.f32 %v407, 0.0
        %v426 = vld [vmem:[%s2 + $0x28] sm:$0xff]
        %v427 = vld [vmem:[%s2 + $0x30] sm:$0xff]
        %v428 = vld [vmem:[%s2 + $0x38] sm:$0xff]
        %v429 = vld [vmem:[%s2 + $0x40] sm:$0xff]
        %v430 = vld [vmem:[%s2 + $0x48] sm:$0xff]
        %v431 = vld [vmem:[%s2 + $0x50] sm:$0xff]
        %vm432 = vcmask 392192
        %v434 = vsel %vm432, %v410, 0
        %v437 = vsel %vm432, %v411, 0
        %v440 = vsel %vm432, %v412, 0
        %v443 = vsel %vm432, %v413, 0
        %v446 = vsel %vm432, %v414, 0
        %v449 = vsel %vm432, %v415, 0
        %v452 = vsel %vm432, %v416, 0
        %v455 = vsel %vm432, %v417, 0
        %v458 = vsel %vm432, %v418, 0
        %v461 = vsel %vm432, %v419, 0
        %v464 = vsel %vm432, %v420, 0
        %v467 = vsel %vm432, %v421, 0
        %v470 = vsel %vm432, %v422, 0
        %v473 = vsel %vm432, %v423, 0
        %v476 = vsel %vm432, %v424, 0
        %v479 = vsel %vm432, %v425, 0
        %481 = vmatprep.subr.mxu0 0.0
        %482 = vmatpush1.msra.mxu0 %v426
        %483 = vmatprep.subr.mxu0 0.0
        %484 = vmatpush1.msra.mxu0 %v427
        %485 = vmatprep.subr.mxu0 0.0
        %486 = vmatpush1.msra.mxu0 %v428
        %487 = vmatprep.subr.mxu0 0.0
        %488 = vmatpush1.msra.mxu0 %v429
        %489 = vmatprep.subr.mxu0 0.0
        %490 = vmatpush1.msra.mxu0 %v430
        %491 = vmatprep.subr.mxu0 0.0
        %492 = vmatpush1.msra.mxu0 %v431
        %493 = vmatprep.subr.mxu0 0.0
        %494 = vmatpush1.msra.mxu0 0.0
        %495 = vmatprep.subr.mxu0 0.0
        %496 = vmatpush1.msra.mxu0 0.0
        %497 = vmatprep.subr.mxu0 0.0
        %498 = vmatpush1.msra.mxu0 0.0
        %499 = vmatprep.subr.mxu0 0.0
        %500 = vmatpush1.msra.mxu0 0.0
        %501 = vmatprep.subr.mxu0 0.0
        %502 = vmatpush1.msra.mxu0 0.0
        %503 = vmatprep.subr.mxu0 0.0
        %504 = vmatpush1.msra.mxu0 0.0
        %505 = vmatprep.subr.mxu0 0.0
        %506 = vmatpush1.msra.mxu0 0.0
        %507 = vmatprep.subr.mxu0 0.0
        %508 = vmatpush1.msra.mxu0 0.0
        %509 = vmatprep.subr.mxu0 0.0
        %510 = vmatpush1.msra.mxu0 0.0
        %511 = vmatprep.subr.mxu0 0.0
        %512 = vmatpush1.msra.mxu0 0.0
        %513 = vmatprep.subr.mxu0 0.0
        %514 = vmatpush1.msra.mxu0 0.0
        %515 = vmatprep.subr.mxu0 0.0
        %516 = vmatpush1.msra.mxu0 0.0
        %517 = vmatprep.subr.mxu0 0.0
        %518 = vmatpush1.msra.mxu0 0.0
        %519 = vmatprep.subr.mxu0 0.0
        %520 = vmatpush1.msra.mxu0 0.0
        %521 = vmatprep.subr.mxu0 0.0
        %522 = vmatpush1.msra.mxu0 0.0
        %523 = vmatprep.subr.mxu0 0.0
        %524 = vmatpush1.msra.mxu0 0.0
        %525 = vmatprep.subr.mxu0 0.0
        %526 = vmatpush1.msra.mxu0 0.0
        %527 = vmatprep.subr.mxu0 0.0
        %528 = vmatpush1.msra.mxu0 0.0
        %529 = vmatprep.subr.mxu0 0.0
        %530 = vmatpush1.msra.mxu0 0.0
        %531 = vmatprep.subr.mxu0 0.0
        %532 = vmatpush1.msra.mxu0 0.0
        %533 = vmatprep.subr.mxu0 0.0
        %534 = vmatpush1.msra.mxu0 0.0
        %535 = vmatprep.subr.mxu0 0.0
        %536 = vmatpush1.msra.mxu0 0.0
        %537 = vmatprep.subr.mxu0 0.0
        %538 = vmatpush1.msra.mxu0 0.0
        %539 = vmatprep.subr.mxu0 0.0
        %540 = vmatpush1.msra.mxu0 0.0
        %541 = vmatprep.subr.mxu0 0.0
        %542 = vmatpush1.msra.mxu0 0.0
        %543 = vmatprep.subr.mxu0 0.0
        %544 = vmatpush1.msra.mxu0 0.0
        %545 = vmatprep.mubr.f32.mxu0 0.0
        %546 = vmatmul.mubr.f32.gmra.mrb[0].mxu0 %v434
        %v547 = vpop.f32.mrb[0].mxu0
        %v548 = vadd.f32 0.0, %v547
        %v549 = vpop.f32.mrb[0].mxu0
        %550 = vmatprep.mubr.f32.mxu0 0.0
        %551 = vmatmul.mubr.f32.gmra.mrb[0].mxu0 %v437
        %v552 = vpop.f32.mrb[0].mxu0
        %v553 = vadd.f32 0.0, %v552
        %v554 = vpop.f32.mrb[0].mxu0
        %555 = vmatprep.mubr.f32.mxu0 0.0
        %556 = vmatmul.mubr.f32.gmra.mrb[0].mxu0 %v440
        %v557 = vpop.f32.mrb[0].mxu0
        %v558 = vadd.f32 0.0, %v557
        %v559 = vpop.f32.mrb[0].mxu0
        %560 = vmatprep.mubr.f32.mxu0 0.0
        %561 = vmatmul.mubr.f32.gmra.mrb[0].mxu0 %v443
        %v562 = vpop.f32.mrb[0].mxu0
        %v563 = vadd.f32 0.0, %v562
        %v564 = vpop.f32.mrb[0].mxu0
        %565 = vmatprep.mubr.f32.mxu0 0.0
        %566 = vmatmul.mubr.f32.gmra.mrb[0].mxu0 %v446
        %v567 = vpop.f32.mrb[0].mxu0
        %v568 = vadd.f32 0.0, %v567
        %v569 = vpop.f32.mrb[0].mxu0
        %570 = vmatprep.mubr.f32.mxu0 0.0
        %571 = vmatmul.mubr.f32.gmra.mrb[0].mxu0 %v449
        %v572 = vpop.f32.mrb[0].mxu0
        %v573 = vadd.f32 0.0, %v572
        %v574 = vpop.f32.mrb[0].mxu0
        %575 = vmatprep.mubr.f32.mxu0 0.0
        %576 = vmatmul.mubr.f32.gmra.mrb[0].mxu0 %v452
        %v577 = vpop.f32.mrb[0].mxu0
        %v578 = vadd.f32 0.0, %v577
        %v579 = vpop.f32.mrb[0].mxu0
        %580 = vmatprep.mubr.f32.mxu0 0.0
        %581 = vmatmul.mubr.f32.gmra.mrb[0].mxu0 %v455
        %v582 = vpop.f32.mrb[0].mxu0
        %v583 = vadd.f32 0.0, %v582
        %v584 = vpop.f32.mrb[0].mxu0
        %585 = vmatprep.mubr.f32.mxu0 0.0
        %586 = vmatmul.mubr.f32.gmra.mrb[0].mxu0 %v458
        %v587 = vpop.f32.mrb[0].mxu0
        %v588 = vadd.f32 0.0, %v587
        %v589 = vpop.f32.mrb[0].mxu0
        %590 = vmatprep.mubr.f32.mxu0 0.0
        %591 = vmatmul.mubr.f32.gmra.mrb[0].mxu0 %v461
        %v592 = vpop.f32.mrb[0].mxu0
        %v593 = vadd.f32 0.0, %v592
        %v594 = vpop.f32.mrb[0].mxu0
        %595 = vmatprep.mubr.f32.mxu0 0.0
        %596 = vmatmul.mubr.f32.gmra.mrb[0].mxu0 %v464
        %v597 = vpop.f32.mrb[0].mxu0
        %v598 = vadd.f32 0.0, %v597
        %v599 = vpop.f32.mrb[0].mxu0
        %600 = vmatprep.mubr.f32.mxu0 0.0
        %601 = vmatmul.mubr.f32.gmra.mrb[0].mxu0 %v467
        %v602 = vpop.f32.mrb[0].mxu0
        %v603 = vadd.f32 0.0, %v602
        %v604 = vpop.f32.mrb[0].mxu0
        %605 = vmatprep.mubr.f32.mxu0 0.0
        %606 = vmatmul.mubr.f32.gmra.mrb[0].mxu0 %v470
        %v607 = vpop.f32.mrb[0].mxu0
        %v608 = vadd.f32 0.0, %v607
        %v609 = vpop.f32.mrb[0].mxu0
        %610 = vmatprep.mubr.f32.mxu0 0.0
        %611 = vmatmul.mubr.f32.gmra.mrb[0].mxu0 %v473
        %v612 = vpop.f32.mrb[0].mxu0
        %v613 = vadd.f32 0.0, %v612
        %v614 = vpop.f32.mrb[0].mxu0
        %615 = vmatprep.mubr.f32.mxu0 0.0
        %616 = vmatmul.mubr.f32.gmra.mrb[0].mxu0 %v476
        %v617 = vpop.f32.mrb[0].mxu0
        %v618 = vadd.f32 0.0, %v617
        %v619 = vpop.f32.mrb[0].mxu0
        %620 = vmatprep.mubr.f32.mxu0 0.0
        %621 = vmatmul.mubr.f32.gmra.mrb[0].mxu0 %v479
        %v622 = vpop.f32.mrb[0].mxu0
        %v623 = vadd.f32 0.0, %v622
        %v624 = vpop.f32.mrb[0].mxu0
        %625 = vdwg.mxu0
        %v626 = vld [vmem:[%s183] sm:$0xff]
        %v627 = vld [vmem:[%s183 + $0x10] sm:$0xff]
        %v628 = vld [vmem:[%s183 + $0x20] sm:$0xff]
        %v629 = vld [vmem:[%s183 + $0x30] sm:$0xff]
        %v630 = vld [vmem:[%s183 + $0x40] sm:$0xff]
        %v631 = vld [vmem:[%s183 + $0x50] sm:$0xff]
        %v632 = vld [vmem:[%s183 + $0x60] sm:$0xff]
        %v633 = vld [vmem:[%s183 + $0x70] sm:$0xff]
        %v634 = vld [vmem:[%s183 + $0x80] sm:$0xff]
        %v635 = vld [vmem:[%s183 + $0x90] sm:$0xff]
        %v636 = vld [vmem:[%s183 + $0xa0] sm:$0xff]
        %v637 = vld [vmem:[%s183 + $0xb0] sm:$0xff]
        %v638 = vld [vmem:[%s183 + $0xc0] sm:$0xff]
        %v639 = vld [vmem:[%s183 + $0xd0] sm:$0xff]
        %v640 = vld [vmem:[%s183 + $0xe0] sm:$0xff]
        %v641 = vld [vmem:[%s183 + $0xf0] sm:$0xff]
        %v642 = vld [vmem:[%s2 + $0x58] sm:$0xff]
        %v643 = vld [vmem:[%s2 + $0x60] sm:$0xff]
        %v644 = vld [vmem:[%s2 + $0x68] sm:$0xff]
        %v645 = vld [vmem:[%s2 + $0x70] sm:$0xff]
        %v646 = vld [vmem:[%s2 + $0x78] sm:$0xff]
        %v647 = vld [vmem:[%s2 + $0x80] sm:$0xff]
        %v648 = vld [vmem:[%s2 + $0x88] sm:$0xff]
        %v649 = vld [vmem:[%s2 + $0x90] sm:$0xff]
        %v650 = vld [vmem:[%s2 + $0x98] sm:$0xff]
        %v651 = vld [vmem:[%s2 + $0xa0] sm:$0xff]
        %v652 = vld [vmem:[%s2 + $0xa8] sm:$0xff]
        %v653 = vld [vmem:[%s2 + $0xb0] sm:$0xff]
        %v654 = vld [vmem:[%s2 + $0xb8] sm:$0xff]
        %v655 = vld [vmem:[%s2 + $0xc0] sm:$0xff]
        %v656 = vld [vmem:[%s2 + $0xc8] sm:$0xff]
        %v657 = vld [vmem:[%s2 + $0xd0] sm:$0xff]
        %658 = vmatprep.subr.mxu0 0.0
        %659 = vmatpush1.msra.mxu0 %v642
        %660 = vmatprep.subr.mxu0 0.0
        %661 = vmatpush1.msra.mxu0 %v643
        %662 = vmatprep.subr.mxu0 0.0
        %663 = vmatpush1.msra.mxu0 %v644
        %664 = vmatprep.subr.mxu0 0.0
        %665 = vmatpush1.msra.mxu0 %v645
        %666 = vmatprep.subr.mxu0 0.0
        %667 = vmatpush1.msra.mxu0 %v646
        %668 = vmatprep.subr.mxu0 0.0
        %669 = vmatpush1.msra.mxu0 %v647
        %670 = vmatprep.subr.mxu0 0.0
        %671 = vmatpush1.msra.mxu0 %v648
        %672 = vmatprep.subr.mxu0 0.0
        %673 = vmatpush1.msra.mxu0 %v649
        %674 = vmatprep.subr.mxu0 0.0
        %675 = vmatpush1.msra.mxu0 %v650
        %676 = vmatprep.subr.mxu0 0.0
        %677 = vmatpush1.msra.mxu0 %v651
        %678 = vmatprep.subr.mxu0 0.0
        %679 = vmatpush1.msra.mxu0 %v652
        %680 = vmatprep.subr.mxu0 0.0
        %681 = vmatpush1.msra.mxu0 %v653
        %682 = vmatprep.subr.mxu0 0.0
        %683 = vmatpush1.msra.mxu0 %v654
        %684 = vmatprep.subr.mxu0 0.0
        %685 = vmatpush1.msra.mxu0 %v655
        %686 = vmatprep.subr.mxu0 0.0
        %687 = vmatpush1.msra.mxu0 %v656
        %688 = vmatprep.subr.mxu0 0.0
        %689 = vmatpush1.msra.mxu0 %v657
        %690 = vmatprep.subr.mxu0 0.0
        %691 = vmatpush1.msra.mxu0 0.0
        %692 = vmatprep.subr.mxu0 0.0
        %693 = vmatpush1.msra.mxu0 0.0
        %694 = vmatprep.subr.mxu0 0.0
        %695 = vmatpush1.msra.mxu0 0.0
        %696 = vmatprep.subr.mxu0 0.0
        %697 = vmatpush1.msra.mxu0 0.0
        %698 = vmatprep.subr.mxu0 0.0
        %699 = vmatpush1.msra.mxu0 0.0
        %700 = vmatprep.subr.mxu0 0.0
        %701 = vmatpush1.msra.mxu0 0.0
        %702 = vmatprep.subr.mxu0 0.0
        %703 = vmatpush1.msra.mxu0 0.0
        %704 = vmatprep.subr.mxu0 0.0
        %705 = vmatpush1.msra.mxu0 0.0
        %706 = vmatprep.subr.mxu0 0.0
        %707 = vmatpush1.msra.mxu0 0.0
        %708 = vmatprep.subr.mxu0 0.0
        %709 = vmatpush1.msra.mxu0 0.0
        %710 = vmatprep.subr.mxu0 0.0
        %711 = vmatpush1.msra.mxu0 0.0
        %712 = vmatprep.subr.mxu0 0.0
        %713 = vmatpush1.msra.mxu0 0.0
        %714 = vmatprep.subr.mxu0 0.0
        %715 = vmatpush1.msra.mxu0 0.0
        %716 = vmatprep.subr.mxu0 0.0
        %717 = vmatpush1.msra.mxu0 0.0
        %718 = vmatprep.subr.mxu0 0.0
        %719 = vmatpush1.msra.mxu0 0.0
        %720 = vmatprep.subr.mxu0 0.0
        %721 = vmatpush1.msra.mxu0 0.0
        %722 = vmatprep.mubr.f32.mxu0 0.0
        %723 = vmatmul.mubr.f32.gmra.mrb[0].mxu0 %v626
        %v724 = vpop.f32.mrb[0].mxu0
        %v725 = vadd.f32 0.0, %v724
        %v726 = vpop.f32.mrb[0].mxu0
        %727 = vmatprep.mubr.f32.mxu0 0.0
        %728 = vmatmul.mubr.f32.gmra.mrb[0].mxu0 %v627
        %v729 = vpop.f32.mrb[0].mxu0
        %v730 = vadd.f32 0.0, %v729
        %v731 = vpop.f32.mrb[0].mxu0
        %732 = vmatprep.mubr.f32.mxu0 0.0
        %733 = vmatmul.mubr.f32.gmra.mrb[0].mxu0 %v628
        %v734 = vpop.f32.mrb[0].mxu0
        %v735 = vadd.f32 0.0, %v734
        %v736 = vpop.f32.mrb[0].mxu0
        %737 = vmatprep.mubr.f32.mxu0 0.0
        %738 = vmatmul.mubr.f32.gmra.mrb[0].mxu0 %v629
        %v739 = vpop.f32.mrb[0].mxu0
        %v740 = vadd.f32 0.0, %v739
        %v741 = vpop.f32.mrb[0].mxu0
        %742 = vmatprep.mubr.f32.mxu0 0.0
        %743 = vmatmul.mubr.f32.gmra.mrb[0].mxu0 %v630
        %v744 = vpop.f32.mrb[0].mxu0
        %v745 = vadd.f32 0.0, %v744
        %v746 = vpop.f32.mrb[0].mxu0
        %747 = vmatprep.mubr.f32.mxu0 0.0
        %748 = vmatmul.mubr.f32.gmra.mrb[0].mxu0 %v631
        %v749 = vpop.f32.mrb[0].mxu0
        %v750 = vadd.f32 0.0, %v749
        %v751 = vpop.f32.mrb[0].mxu0
        %752 = vmatprep.mubr.f32.mxu0 0.0
        %753 = vmatmul.mubr.f32.gmra.mrb[0].mxu0 %v632
        %v754 = vpop.f32.mrb[0].mxu0
        %v755 = vadd.f32 0.0, %v754
        %v756 = vpop.f32.mrb[0].mxu0
        %757 = vmatprep.mubr.f32.mxu0 0.0
        %758 = vmatmul.mubr.f32.gmra.mrb[0].mxu0 %v633
        %v759 = vpop.f32.mrb[0].mxu0
        %v760 = vadd.f32 0.0, %v759
        %v761 = vpop.f32.mrb[0].mxu0
        %762 = vmatprep.mubr.f32.mxu0 0.0
        %763 = vmatmul.mubr.f32.gmra.mrb[0].mxu0 %v634
        %v764 = vpop.f32.mrb[0].mxu0
        %v765 = vadd.f32 0.0, %v764
        %v766 = vpop.f32.mrb[0].mxu0
        %767 = vmatprep.mubr.f32.mxu0 0.0
        %768 = vmatmul.mubr.f32.gmra.mrb[0].mxu0 %v635
        %v769 = vpop.f32.mrb[0].mxu0
        %v770 = vadd.f32 0.0, %v769
        %v771 = vpop.f32.mrb[0].mxu0
        %772 = vmatprep.mubr.f32.mxu0 0.0
        %773 = vmatmul.mubr.f32.gmra.mrb[0].mxu0 %v636
        %v774 = vpop.f32.mrb[0].mxu0
        %v775 = vadd.f32 0.0, %v774
        %v776 = vpop.f32.mrb[0].mxu0
        %777 = vmatprep.mubr.f32.mxu0 0.0
        %778 = vmatmul.mubr.f32.gmra.mrb[0].mxu0 %v637
        %v779 = vpop.f32.mrb[0].mxu0
        %v780 = vadd.f32 0.0, %v779
        %v781 = vpop.f32.mrb[0].mxu0
        %782 = vmatprep.mubr.f32.mxu0 0.0
        %783 = vmatmul.mubr.f32.gmra.mrb[0].mxu0 %v638
        %v784 = vpop.f32.mrb[0].mxu0
        %v785 = vadd.f32 0.0, %v784
        %v786 = vpop.f32.mrb[0].mxu0
        %787 = vmatprep.mubr.f32.mxu0 0.0
        %788 = vmatmul.mubr.f32.gmra.mrb[0].mxu0 %v639
        %v789 = vpop.f32.mrb[0].mxu0
        %v790 = vadd.f32 0.0, %v789
        %v791 = vpop.f32.mrb[0].mxu0
        %792 = vmatprep.mubr.f32.mxu0 0.0
        %793 = vmatmul.mubr.f32.gmra.mrb[0].mxu0 %v640
        %v794 = vpop.f32.mrb[0].mxu0
        %v795 = vadd.f32 0.0, %v794
        %v796 = vpop.f32.mrb[0].mxu0
        %797 = vmatprep.mubr.f32.mxu0 0.0
        %798 = vmatmul.mubr.f32.gmra.mrb[0].mxu0 %v641
        %v799 = vpop.f32.mrb[0].mxu0
        %v800 = vadd.f32 0.0, %v799
        %v801 = vpop.f32.mrb[0].mxu0
        %802 = vdwg.mxu0
        %s803 = sld [smem:[#allocation2]]
        %s804 = sld [smem:[#allocation2 + $0x1]]
        %s805 = sld [smem:[#allocation2 + $0x2]]
        %v806 = vstv %s805
        %vm807 = vcmp.ge.f32.partialorder %v191, %v806
        %vm808 = vcmp.ge.f32.partialorder %v192, %v806
        %vm809 = vcmp.ge.f32.partialorder %v193, %v806
        %vm810 = vcmp.ge.f32.partialorder %v194, %v806
        %vm811 = vcmp.ge.f32.partialorder %v195, %v806
        %vm812 = vcmp.ge.f32.partialorder %v196, %v806
        %vm813 = vcmp.ge.f32.partialorder %v197, %v806
        %vm814 = vcmp.ge.f32.partialorder %v198, %v806
        %vm815 = vcmp.ge.f32.partialorder %v199, %v806
        %vm816 = vcmp.ge.f32.partialorder %v200, %v806
        %vm817 = vcmp.ge.f32.partialorder %v201, %v806
        %vm818 = vcmp.ge.f32.partialorder %v202, %v806
        %vm819 = vcmp.ge.f32.partialorder %v203, %v806
        %vm820 = vcmp.ge.f32.partialorder %v204, %v806
        %vm821 = vcmp.ge.f32.partialorder %v205, %v806
        %vm822 = vcmp.ge.f32.partialorder %v206, %v806
        %v823 = vsel %vm807, 1, 0
        %v824 = vsel %vm808, 1, 0
        %v825 = vsel %vm809, 1, 0
        %v826 = vsel %vm810, 1, 0
        %v827 = vsel %vm811, 1, 0
        %v828 = vsel %vm812, 1, 0
        %v829 = vsel %vm813, 1, 0
        %v830 = vsel %vm814, 1, 0
        %v831 = vsel %vm815, 1, 0
        %v832 = vsel %vm816, 1, 0
        %v833 = vsel %vm817, 1, 0
        %v834 = vsel %vm818, 1, 0
        %v835 = vsel %vm819, 1, 0
        %v836 = vsel %vm820, 1, 0
        %v837 = vsel %vm821, 1, 0
        %v838 = vsel %vm822, 1, 0
        %v839 = vcvt.s32.f32 %v823
        %v840 = vcvt.s32.f32 %v824
        %v841 = vcvt.s32.f32 %v825
        %v842 = vcvt.s32.f32 %v826
        %v843 = vcvt.s32.f32 %v827
        %v844 = vcvt.s32.f32 %v828
        %v845 = vcvt.s32.f32 %v829
        %v846 = vcvt.s32.f32 %v830
        %v847 = vcvt.s32.f32 %v831
        %v848 = vcvt.s32.f32 %v832
        %v849 = vcvt.s32.f32 %v833
        %v850 = vcvt.s32.f32 %v834
        %v851 = vcvt.s32.f32 %v835
        %v852 = vcvt.s32.f32 %v836
        %v853 = vcvt.s32.f32 %v837
        %v854 = vcvt.s32.f32 %v838
        %s855 = sld [smem:[#allocation2 + $0x6]]
        %v856 = vstv %s855
        %v857 = vmul.f32 %v839, %v856
        %v858 = vmul.f32 %v840, %v856
        %v859 = vmul.f32 %v841, %v856
        %v860 = vmul.f32 %v842, %v856
        %v861 = vmul.f32 %v843, %v856
        %v862 = vmul.f32 %v844, %v856
        %v863 = vmul.f32 %v845, %v856
        %v864 = vmul.f32 %v846, %v856
        %v865 = vmul.f32 %v847, %v856
        %v866 = vmul.f32 %v848, %v856
        %v867 = vmul.f32 %v849, %v856
        %v868 = vmul.f32 %v850, %v856
        %v869 = vmul.f32 %v851, %v856
        %v870 = vmul.f32 %v852, %v856
        %v871 = vmul.f32 %v853, %v856
        %v872 = vmul.f32 %v854, %v856
        %v873 = vstv %s803
        %v874 = vadd.f32 %v873, %v857
        %v875 = vadd.f32 %v873, %v858
        %v876 = vadd.f32 %v873, %v859
        %v877 = vadd.f32 %v873, %v860
        %v878 = vadd.f32 %v873, %v861
        %v879 = vadd.f32 %v873, %v862
        %v880 = vadd.f32 %v873, %v863
        %v881 = vadd.f32 %v873, %v864
        %v882 = vadd.f32 %v873, %v865
        %v883 = vadd.f32 %v873, %v866
        %v884 = vadd.f32 %v873, %v867
        %v885 = vadd.f32 %v873, %v868
        %v886 = vadd.f32 %v873, %v869
        %v887 = vadd.f32 %v873, %v870
        %v888 = vadd.f32 %v873, %v871
        %v889 = vadd.f32 %v873, %v872
        %s890 = sld [smem:[#allocation2 + $0xa]]
        %v891 = vstv %s890
        %v892 = vmul.f32 %v839, %v891
        %v893 = vmul.f32 %v840, %v891
        %v894 = vmul.f32 %v841, %v891
        %v895 = vmul.f32 %v842, %v891
        %v896 = vmul.f32 %v843, %v891
        %v897 = vmul.f32 %v844, %v891
        %v898 = vmul.f32 %v845, %v891
        %v899 = vmul.f32 %v846, %v891
        %v900 = vmul.f32 %v847, %v891
        %v901 = vmul.f32 %v848, %v891
        %v902 = vmul.f32 %v849, %v891
        %v903 = vmul.f32 %v850, %v891
        %v904 = vmul.f32 %v851, %v891
        %v905 = vmul.f32 %v852, %v891
        %v906 = vmul.f32 %v853, %v891
        %v907 = vmul.f32 %v854, %v891
        %v908 = vstv %s804
        %v909 = vadd.f32 %v908, %v892
        %v910 = vadd.f32 %v908, %v893
        %v911 = vadd.f32 %v908, %v894
        %v912 = vadd.f32 %v908, %v895
        %v913 = vadd.f32 %v908, %v896
        %v914 = vadd.f32 %v908, %v897
        %v915 = vadd.f32 %v908, %v898
        %v916 = vadd.f32 %v908, %v899
        %v917 = vadd.f32 %v908, %v900
        %v918 = vadd.f32 %v908, %v901
        %v919 = vadd.f32 %v908, %v902
        %v920 = vadd.f32 %v908, %v903
        %v921 = vadd.f32 %v908, %v904
        %v922 = vadd.f32 %v908, %v905
        %v923 = vadd.f32 %v908, %v906
        %v924 = vadd.f32 %v908, %v907
        %s925 = sld [smem:[#allocation2 + $0x3]]
        %v926 = vstv %s925
        %vm927 = vcmp.ge.f32.partialorder %v191, %v926
        %vm928 = vcmp.ge.f32.partialorder %v192, %v926
        %vm929 = vcmp.ge.f32.partialorder %v193, %v926
        %vm930 = vcmp.ge.f32.partialorder %v194, %v926
        %vm931 = vcmp.ge.f32.partialorder %v195, %v926
        %vm932 = vcmp.ge.f32.partialorder %v196, %v926
        %vm933 = vcmp.ge.f32.partialorder %v197, %v926
        %vm934 = vcmp.ge.f32.partialorder %v198, %v926
        %vm935 = vcmp.ge.f32.partialorder %v199, %v926
        %vm936 = vcmp.ge.f32.partialorder %v200, %v926
        %vm937 = vcmp.ge.f32.partialorder %v201, %v926
        %vm938 = vcmp.ge.f32.partialorder %v202, %v926
        %vm939 = vcmp.ge.f32.partialorder %v203, %v926
        %vm940 = vcmp.ge.f32.partialorder %v204, %v926
        %vm941 = vcmp.ge.f32.partialorder %v205, %v926
        %vm942 = vcmp.ge.f32.partialorder %v206, %v926
        %v943 = vsel %vm927, 1, 0
        %v944 = vsel %vm928, 1, 0
        %v945 = vsel %vm929, 1, 0
        %v946 = vsel %vm930, 1, 0
        %v947 = vsel %vm931, 1, 0
        %v948 = vsel %vm932, 1, 0
        %v949 = vsel %vm933, 1, 0
        %v950 = vsel %vm934, 1, 0
        %v951 = vsel %vm935, 1, 0
        %v952 = vsel %vm936, 1, 0
        %v953 = vsel %vm937, 1, 0
        %v954 = vsel %vm938, 1, 0
        %v955 = vsel %vm939, 1, 0
        %v956 = vsel %vm940, 1, 0
        %v957 = vsel %vm941, 1, 0
        %v958 = vsel %vm942, 1, 0
        %v959 = vcvt.s32.f32 %v943
        %v960 = vcvt.s32.f32 %v944
        %v961 = vcvt.s32.f32 %v945
        %v962 = vcvt.s32.f32 %v946
        %v963 = vcvt.s32.f32 %v947
        %v964 = vcvt.s32.f32 %v948
        %v965 = vcvt.s32.f32 %v949
        %v966 = vcvt.s32.f32 %v950
        %v967 = vcvt.s32.f32 %v951
        %v968 = vcvt.s32.f32 %v952
        %v969 = vcvt.s32.f32 %v953
        %v970 = vcvt.s32.f32 %v954
        %v971 = vcvt.s32.f32 %v955
        %v972 = vcvt.s32.f32 %v956
        %v973 = vcvt.s32.f32 %v957
        %v974 = vcvt.s32.f32 %v958
        %s975 = sld [smem:[#allocation2 + $0x7]]
        %v976 = vstv %s975
        %v977 = vmul.f32 %v959, %v976
        %v978 = vmul.f32 %v960, %v976
        %v979 = vmul.f32 %v961, %v976
        %v980 = vmul.f32 %v962, %v976
        %v981 = vmul.f32 %v963, %v976
        %v982 = vmul.f32 %v964, %v976
        %v983 = vmul.f32 %v965, %v976
        %v984 = vmul.f32 %v966, %v976
        %v985 = vmul.f32 %v967, %v976
        %v986 = vmul.f32 %v968, %v976
        %v987 = vmul.f32 %v969, %v976
        %v988 = vmul.f32 %v970, %v976
        %v989 = vmul.f32 %v971, %v976
        %v990 = vmul.f32 %v972, %v976
        %v991 = vmul.f32 %v973, %v976
        %v992 = vmul.f32 %v974, %v976
        %v993 = vadd.f32 %v874, %v977
        %v994 = vadd.f32 %v875, %v978
        %v995 = vadd.f32 %v876, %v979
        %v996 = vadd.f32 %v877, %v980
        %v997 = vadd.f32 %v878, %v981
        %v998 = vadd.f32 %v879, %v982
        %v999 = vadd.f32 %v880, %v983
        %v1000 = vadd.f32 %v881, %v984
        %v1001 = vadd.f32 %v882, %v985
        %v1002 = vadd.f32 %v883, %v986
        %v1003 = vadd.f32 %v884, %v987
        %v1004 = vadd.f32 %v885, %v988
        %v1005 = vadd.f32 %v886, %v989
        %v1006 = vadd.f32 %v887, %v990
        %v1007 = vadd.f32 %v888, %v991
        %v1008 = vadd.f32 %v889, %v992
        %s1009 = sld [smem:[#allocation2 + $0xb]]
        %v1010 = vstv %s1009
        %v1011 = vmul.f32 %v959, %v1010
        %v1012 = vmul.f32 %v960, %v1010
        %v1013 = vmul.f32 %v961, %v1010
        %v1014 = vmul.f32 %v962, %v1010
        %v1015 = vmul.f32 %v963, %v1010
        %v1016 = vmul.f32 %v964, %v1010
        %v1017 = vmul.f32 %v965, %v1010
        %v1018 = vmul.f32 %v966, %v1010
        %v1019 = vmul.f32 %v967, %v1010
        %v1020 = vmul.f32 %v968, %v1010
        %v1021 = vmul.f32 %v969, %v1010
        %v1022 = vmul.f32 %v970, %v1010
        %v1023 = vmul.f32 %v971, %v1010
        %v1024 = vmul.f32 %v972, %v1010
        %v1025 = vmul.f32 %v973, %v1010
        %v1026 = vmul.f32 %v974, %v1010
        %v1027 = vadd.f32 %v909, %v1011
        %v1028 = vadd.f32 %v910, %v1012
        %v1029 = vadd.f32 %v911, %v1013
        %v1030 = vadd.f32 %v912, %v1014
        %v1031 = vadd.f32 %v913, %v1015
        %v1032 = vadd.f32 %v914, %v1016
        %v1033 = vadd.f32 %v915, %v1017
        %v1034 = vadd.f32 %v916, %v1018
        %v1035 = vadd.f32 %v917, %v1019
        %v1036 = vadd.f32 %v918, %v1020
        %v1037 = vadd.f32 %v919, %v1021
        %v1038 = vadd.f32 %v920, %v1022
        %v1039 = vadd.f32 %v921, %v1023
        %v1040 = vadd.f32 %v922, %v1024
        %v1041 = vadd.f32 %v923, %v1025
        %v1042 = vadd.f32 %v924, %v1026
        %s1043 = sld [smem:[#allocation2 + $0x4]]
        %v1044 = vstv %s1043
        %vm1045 = vcmp.ge.f32.partialorder %v191, %v1044
        %vm1046 = vcmp.ge.f32.partialorder %v192, %v1044
        %vm1047 = vcmp.ge.f32.partialorder %v193, %v1044
        %vm1048 = vcmp.ge.f32.partialorder %v194, %v1044
        %vm1049 = vcmp.ge.f32.partialorder %v195, %v1044
        %vm1050 = vcmp.ge.f32.partialorder %v196, %v1044
        %vm1051 = vcmp.ge.f32.partialorder %v197, %v1044
        %vm1052 = vcmp.ge.f32.partialorder %v198, %v1044
        %vm1053 = vcmp.ge.f32.partialorder %v199, %v1044
        %vm1054 = vcmp.ge.f32.partialorder %v200, %v1044
        %vm1055 = vcmp.ge.f32.partialorder %v201, %v1044
        %vm1056 = vcmp.ge.f32.partialorder %v202, %v1044
        %vm1057 = vcmp.ge.f32.partialorder %v203, %v1044
        %vm1058 = vcmp.ge.f32.partialorder %v204, %v1044
        %vm1059 = vcmp.ge.f32.partialorder %v205, %v1044
        %vm1060 = vcmp.ge.f32.partialorder %v206, %v1044
        %v1061 = vsel %vm1045, 1, 0
        %v1062 = vsel %vm1046, 1, 0
        %v1063 = vsel %vm1047, 1, 0
        %v1064 = vsel %vm1048, 1, 0
        %v1065 = vsel %vm1049, 1, 0
        %v1066 = vsel %vm1050, 1, 0
        %v1067 = vsel %vm1051, 1, 0
        %v1068 = vsel %vm1052, 1, 0
        %v1069 = vsel %vm1053, 1, 0
        %v1070 = vsel %vm1054, 1, 0
        %v1071 = vsel %vm1055, 1, 0
        %v1072 = vsel %vm1056, 1, 0
        %v1073 = vsel %vm1057, 1, 0
        %v1074 = vsel %vm1058, 1, 0
        %v1075 = vsel %vm1059, 1, 0
        %v1076 = vsel %vm1060, 1, 0
        %v1077 = vcvt.s32.f32 %v1061
        %v1078 = vcvt.s32.f32 %v1062
        %v1079 = vcvt.s32.f32 %v1063
        %v1080 = vcvt.s32.f32 %v1064
        %v1081 = vcvt.s32.f32 %v1065
        %v1082 = vcvt.s32.f32 %v1066
        %v1083 = vcvt.s32.f32 %v1067
        %v1084 = vcvt.s32.f32 %v1068
        %v1085 = vcvt.s32.f32 %v1069
        %v1086 = vcvt.s32.f32 %v1070
        %v1087 = vcvt.s32.f32 %v1071
        %v1088 = vcvt.s32.f32 %v1072
        %v1089 = vcvt.s32.f32 %v1073
        %v1090 = vcvt.s32.f32 %v1074
        %v1091 = vcvt.s32.f32 %v1075
        %v1092 = vcvt.s32.f32 %v1076
        %s1093 = sld [smem:[#allocation2 + $0x8]]
        %v1094 = vstv %s1093
        %v1095 = vmul.f32 %v1077, %v1094
        %v1096 = vmul.f32 %v1078, %v1094
        %v1097 = vmul.f32 %v1079, %v1094
        %v1098 = vmul.f32 %v1080, %v1094
        %v1099 = vmul.f32 %v1081, %v1094
        %v1100 = vmul.f32 %v1082, %v1094
        %v1101 = vmul.f32 %v1083, %v1094
        %v1102 = vmul.f32 %v1084, %v1094
        %v1103 = vmul.f32 %v1085, %v1094
        %v1104 = vmul.f32 %v1086, %v1094
        %v1105 = vmul.f32 %v1087, %v1094
        %v1106 = vmul.f32 %v1088, %v1094
        %v1107 = vmul.f32 %v1089, %v1094
        %v1108 = vmul.f32 %v1090, %v1094
        %v1109 = vmul.f32 %v1091, %v1094
        %v1110 = vmul.f32 %v1092, %v1094
        %v1111 = vadd.f32 %v993, %v1095
        %v1112 = vadd.f32 %v994, %v1096
        %v1113 = vadd.f32 %v995, %v1097
        %v1114 = vadd.f32 %v996, %v1098
        %v1115 = vadd.f32 %v997, %v1099
        %v1116 = vadd.f32 %v998, %v1100
        %v1117 = vadd.f32 %v999, %v1101
        %v1118 = vadd.f32 %v1000, %v1102
        %v1119 = vadd.f32 %v1001, %v1103
        %v1120 = vadd.f32 %v1002, %v1104
        %v1121 = vadd.f32 %v1003, %v1105
        %v1122 = vadd.f32 %v1004, %v1106
        %v1123 = vadd.f32 %v1005, %v1107
        %v1124 = vadd.f32 %v1006, %v1108
        %v1125 = vadd.f32 %v1007, %v1109
        %v1126 = vadd.f32 %v1008, %v1110
        %s1127 = sld [smem:[#allocation2 + $0xc]]
        %v1128 = vstv %s1127
        %v1129 = vmul.f32 %v1077, %v1128
        %v1130 = vmul.f32 %v1078, %v1128
        %v1131 = vmul.f32 %v1079, %v1128
        %v1132 = vmul.f32 %v1080, %v1128
        %v1133 = vmul.f32 %v1081, %v1128
        %v1134 = vmul.f32 %v1082, %v1128
        %v1135 = vmul.f32 %v1083, %v1128
        %v1136 = vmul.f32 %v1084, %v1128
        %v1137 = vmul.f32 %v1085, %v1128
        %v1138 = vmul.f32 %v1086, %v1128
        %v1139 = vmul.f32 %v1087, %v1128
        %v1140 = vmul.f32 %v1088, %v1128
        %v1141 = vmul.f32 %v1089, %v1128
        %v1142 = vmul.f32 %v1090, %v1128
        %v1143 = vmul.f32 %v1091, %v1128
        %v1144 = vmul.f32 %v1092, %v1128
        %v1145 = vadd.f32 %v1027, %v1129
        %v1146 = vadd.f32 %v1028, %v1130
        %v1147 = vadd.f32 %v1029, %v1131
        %v1148 = vadd.f32 %v1030, %v1132
        %v1149 = vadd.f32 %v1031, %v1133
        %v1150 = vadd.f32 %v1032, %v1134
        %v1151 = vadd.f32 %v1033, %v1135
        %v1152 = vadd.f32 %v1034, %v1136
        %v1153 = vadd.f32 %v1035, %v1137
        %v1154 = vadd.f32 %v1036, %v1138
        %v1155 = vadd.f32 %v1037, %v1139
        %v1156 = vadd.f32 %v1038, %v1140
        %v1157 = vadd.f32 %v1039, %v1141
        %v1158 = vadd.f32 %v1040, %v1142
        %v1159 = vadd.f32 %v1041, %v1143
        %v1160 = vadd.f32 %v1042, %v1144
        %s1161 = sld [smem:[#allocation2 + $0x5]]
        %v1162 = vstv %s1161
        %vm1163 = vcmp.ge.f32.partialorder %v191, %v1162
        %vm1164 = vcmp.ge.f32.partialorder %v192, %v1162
        %vm1165 = vcmp.ge.f32.partialorder %v193, %v1162
        %vm1166 = vcmp.ge.f32.partialorder %v194, %v1162
        %vm1167 = vcmp.ge.f32.partialorder %v195, %v1162
        %vm1168 = vcmp.ge.f32.partialorder %v196, %v1162
        %vm1169 = vcmp.ge.f32.partialorder %v197, %v1162
        %vm1170 = vcmp.ge.f32.partialorder %v198, %v1162
        %vm1171 = vcmp.ge.f32.partialorder %v199, %v1162
        %vm1172 = vcmp.ge.f32.partialorder %v200, %v1162
        %vm1173 = vcmp.ge.f32.partialorder %v201, %v1162
        %vm1174 = vcmp.ge.f32.partialorder %v202, %v1162
        %vm1175 = vcmp.ge.f32.partialorder %v203, %v1162
        %vm1176 = vcmp.ge.f32.partialorder %v204, %v1162
        %vm1177 = vcmp.ge.f32.partialorder %v205, %v1162
        %vm1178 = vcmp.ge.f32.partialorder %v206, %v1162
        %v1179 = vsel %vm1163, 1, 0
        %v1180 = vsel %vm1164, 1, 0
        %v1181 = vsel %vm1165, 1, 0
        %v1182 = vsel %vm1166, 1, 0
        %v1183 = vsel %vm1167, 1, 0
        %v1184 = vsel %vm1168, 1, 0
        %v1185 = vsel %vm1169, 1, 0
        %v1186 = vsel %vm1170, 1, 0
        %v1187 = vsel %vm1171, 1, 0
        %v1188 = vsel %vm1172, 1, 0
        %v1189 = vsel %vm1173, 1, 0
        %v1190 = vsel %vm1174, 1, 0
        %v1191 = vsel %vm1175, 1, 0
        %v1192 = vsel %vm1176, 1, 0
        %v1193 = vsel %vm1177, 1, 0
        %v1194 = vsel %vm1178, 1, 0
        %v1195 = vcvt.s32.f32 %v1179
        %v1196 = vcvt.s32.f32 %v1180
        %v1197 = vcvt.s32.f32 %v1181
        %v1198 = vcvt.s32.f32 %v1182
        %v1199 = vcvt.s32.f32 %v1183
        %v1200 = vcvt.s32.f32 %v1184
        %v1201 = vcvt.s32.f32 %v1185
        %v1202 = vcvt.s32.f32 %v1186
        %v1203 = vcvt.s32.f32 %v1187
        %v1204 = vcvt.s32.f32 %v1188
        %v1205 = vcvt.s32.f32 %v1189
        %v1206 = vcvt.s32.f32 %v1190
        %v1207 = vcvt.s32.f32 %v1191
        %v1208 = vcvt.s32.f32 %v1192
        %v1209 = vcvt.s32.f32 %v1193
        %v1210 = vcvt.s32.f32 %v1194
        %s1211 = sld [smem:[#allocation2 + $0x9]]
        %v1212 = vstv %s1211
        %v1213 = vmul.f32 %v1195, %v1212
        %v1214 = vmul.f32 %v1196, %v1212
        %v1215 = vmul.f32 %v1197, %v1212
        %v1216 = vmul.f32 %v1198, %v1212
        %v1217 = vmul.f32 %v1199, %v1212
        %v1218 = vmul.f32 %v1200, %v1212
        %v1219 = vmul.f32 %v1201, %v1212
        %v1220 = vmul.f32 %v1202, %v1212
        %v1221 = vmul.f32 %v1203, %v1212
        %v1222 = vmul.f32 %v1204, %v1212
        %v1223 = vmul.f32 %v1205, %v1212
        %v1224 = vmul.f32 %v1206, %v1212
        %v1225 = vmul.f32 %v1207, %v1212
        %v1226 = vmul.f32 %v1208, %v1212
        %v1227 = vmul.f32 %v1209, %v1212
        %v1228 = vmul.f32 %v1210, %v1212
        %v1229 = vadd.f32 %v1111, %v1213
        %v1230 = vadd.f32 %v1112, %v1214
        %v1231 = vadd.f32 %v1113, %v1215
        %v1232 = vadd.f32 %v1114, %v1216
        %v1233 = vadd.f32 %v1115, %v1217
        %v1234 = vadd.f32 %v1116, %v1218
        %v1235 = vadd.f32 %v1117, %v1219
        %v1236 = vadd.f32 %v1118, %v1220
        %v1237 = vadd.f32 %v1119, %v1221
        %v1238 = vadd.f32 %v1120, %v1222
        %v1239 = vadd.f32 %v1121, %v1223
        %v1240 = vadd.f32 %v1122, %v1224
        %v1241 = vadd.f32 %v1123, %v1225
        %v1242 = vadd.f32 %v1124, %v1226
        %v1243 = vadd.f32 %v1125, %v1227
        %v1244 = vadd.f32 %v1126, %v1228
        %s1245 = sld [smem:[#allocation2 + $0xd]]
        %v1246 = vstv %s1245
        %v1247 = vmul.f32 %v1195, %v1246
        %v1248 = vmul.f32 %v1196, %v1246
        %v1249 = vmul.f32 %v1197, %v1246
        %v1250 = vmul.f32 %v1198, %v1246
        %v1251 = vmul.f32 %v1199, %v1246
        %v1252 = vmul.f32 %v1200, %v1246
        %v1253 = vmul.f32 %v1201, %v1246
        %v1254 = vmul.f32 %v1202, %v1246
        %v1255 = vmul.f32 %v1203, %v1246
        %v1256 = vmul.f32 %v1204, %v1246
        %v1257 = vmul.f32 %v1205, %v1246
        %v1258 = vmul.f32 %v1206, %v1246
        %v1259 = vmul.f32 %v1207, %v1246
        %v1260 = vmul.f32 %v1208, %v1246
        %v1261 = vmul.f32 %v1209, %v1246
        %v1262 = vmul.f32 %v1210, %v1246
        %v1263 = vadd.f32 %v1145, %v1247
        %v1264 = vadd.f32 %v1146, %v1248
        %v1265 = vadd.f32 %v1147, %v1249
        %v1266 = vadd.f32 %v1148, %v1250
        %v1267 = vadd.f32 %v1149, %v1251
        %v1268 = vadd.f32 %v1150, %v1252
        %v1269 = vadd.f32 %v1151, %v1253
        %v1270 = vadd.f32 %v1152, %v1254
        %v1271 = vadd.f32 %v1153, %v1255
        %v1272 = vadd.f32 %v1154, %v1256
        %v1273 = vadd.f32 %v1155, %v1257
        %v1274 = vadd.f32 %v1156, %v1258
        %v1275 = vadd.f32 %v1157, %v1259
        %v1276 = vadd.f32 %v1158, %v1260
        %v1277 = vadd.f32 %v1159, %v1261
        %v1278 = vadd.f32 %v1160, %v1262
        %v1279 = vmul.f32 %v1229, %v191
        %v1280 = vmul.f32 %v1230, %v192
        %v1281 = vmul.f32 %v1231, %v193
        %v1282 = vmul.f32 %v1232, %v194
        %v1283 = vmul.f32 %v1233, %v195
        %v1284 = vmul.f32 %v1234, %v196
        %v1285 = vmul.f32 %v1235, %v197
        %v1286 = vmul.f32 %v1236, %v198
        %v1287 = vmul.f32 %v1237, %v199
        %v1288 = vmul.f32 %v1238, %v200
        %v1289 = vmul.f32 %v1239, %v201
        %v1290 = vmul.f32 %v1240, %v202
        %v1291 = vmul.f32 %v1241, %v203
        %v1292 = vmul.f32 %v1242, %v204
        %v1293 = vmul.f32 %v1243, %v205
        %v1294 = vmul.f32 %v1244, %v206
        %v1295 = vadd.f32 %v1279, %v1263
        %v1296 = vadd.f32 %v1280, %v1264
        %v1297 = vadd.f32 %v1281, %v1265
        %v1298 = vadd.f32 %v1282, %v1266
        %v1299 = vadd.f32 %v1283, %v1267
        %v1300 = vadd.f32 %v1284, %v1268
        %v1301 = vadd.f32 %v1285, %v1269
        %v1302 = vadd.f32 %v1286, %v1270
        %v1303 = vadd.f32 %v1287, %v1271
        %v1304 = vadd.f32 %v1288, %v1272
        %v1305 = vadd.f32 %v1289, %v1273
        %v1306 = vadd.f32 %v1290, %v1274
        %v1307 = vadd.f32 %v1291, %v1275
        %v1308 = vadd.f32 %v1292, %v1276
        %v1309 = vadd.f32 %v1293, %v1277
        %v1310 = vadd.f32 %v1294, %v1278
        %1327 = vrot.lane.b32.xlu0 %v725, 24
        %v1328 = vpop.permute.xlu0 %1327
        %1329 = vrot.lane.b32.xlu0 %v730, 24
        %v1330 = vpop.permute.xlu0 %1329
        %1331 = vrot.lane.b32.xlu0 %v735, 24
        %v1332 = vpop.permute.xlu0 %1331
        %1333 = vrot.lane.b32.xlu0 %v740, 24
        %v1334 = vpop.permute.xlu0 %1333
        %1335 = vrot.lane.b32.xlu0 %v745, 24
        %v1336 = vpop.permute.xlu0 %1335
        %1337 = vrot.lane.b32.xlu0 %v750, 24
        %v1338 = vpop.permute.xlu0 %1337
        %1339 = vrot.lane.b32.xlu0 %v755, 24
        %v1340 = vpop.permute.xlu0 %1339
        %1341 = vrot.lane.b32.xlu0 %v760, 24
        %v1342 = vpop.permute.xlu0 %1341
        %1343 = vrot.lane.b32.xlu0 %v765, 24
        %v1344 = vpop.permute.xlu0 %1343
        %1345 = vrot.lane.b32.xlu0 %v770, 24
        %v1346 = vpop.permute.xlu0 %1345
        %1347 = vrot.lane.b32.xlu0 %v775, 24
        %v1348 = vpop.permute.xlu0 %1347
        %1349 = vrot.lane.b32.xlu0 %v780, 24
        %v1350 = vpop.permute.xlu0 %1349
        %1351 = vrot.lane.b32.xlu0 %v785, 24
        %v1352 = vpop.permute.xlu0 %1351
        %1353 = vrot.lane.b32.xlu0 %v790, 24
        %v1354 = vpop.permute.xlu0 %1353
        %1355 = vrot.lane.b32.xlu0 %v795, 24
        %v1356 = vpop.permute.xlu0 %1355
        %1357 = vrot.lane.b32.xlu0 %v800, 24
        %v1358 = vpop.permute.xlu0 %1357
        %v1375 = vmul.f32 %v1295, %v1328
        %v1376 = vmul.f32 %v1296, %v1330
        %v1377 = vmul.f32 %v1297, %v1332
        %v1378 = vmul.f32 %v1298, %v1334
        %v1379 = vmul.f32 %v1299, %v1336
        %v1380 = vmul.f32 %v1300, %v1338
        %v1381 = vmul.f32 %v1301, %v1340
        %v1382 = vmul.f32 %v1302, %v1342
        %v1383 = vmul.f32 %v1303, %v1344
        %v1384 = vmul.f32 %v1304, %v1346
        %v1385 = vmul.f32 %v1305, %v1348
        %v1386 = vmul.f32 %v1306, %v1350
        %v1387 = vmul.f32 %v1307, %v1352
        %v1388 = vmul.f32 %v1308, %v1354
        %v1389 = vmul.f32 %v1309, %v1356
        %v1390 = vmul.f32 %v1310, %v1358
        %v1391 = vadd.f32 %v1295, %v1375
        %v1392 = vadd.f32 %v1296, %v1376
        %v1393 = vadd.f32 %v1297, %v1377
        %v1394 = vadd.f32 %v1298, %v1378
        %v1395 = vadd.f32 %v1299, %v1379
        %v1396 = vadd.f32 %v1300, %v1380
        %v1397 = vadd.f32 %v1301, %v1381
        %v1398 = vadd.f32 %v1302, %v1382
        %v1399 = vadd.f32 %v1303, %v1383
        %v1400 = vadd.f32 %v1304, %v1384
        %v1401 = vadd.f32 %v1305, %v1385
        %v1402 = vadd.f32 %v1306, %v1386
        %v1403 = vadd.f32 %v1307, %v1387
        %v1404 = vadd.f32 %v1308, %v1388
        %v1405 = vadd.f32 %v1309, %v1389
        %v1406 = vadd.f32 %v1310, %v1390
        %1423 = vrot.lane.b32.xlu0 %v548, 32
        %v1424 = vpop.permute.xlu0 %1423
        %1425 = vrot.lane.b32.xlu0 %v553, 32
        %v1426 = vpop.permute.xlu0 %1425
        %1427 = vrot.lane.b32.xlu0 %v558, 32
        %v1428 = vpop.permute.xlu0 %1427
        %1429 = vrot.lane.b32.xlu0 %v563, 32
        %v1430 = vpop.permute.xlu0 %1429
        %1431 = vrot.lane.b32.xlu0 %v568, 32
        %v1432 = vpop.permute.xlu0 %1431
        %1433 = vrot.lane.b32.xlu0 %v573, 32
        %v1434 = vpop.permute.xlu0 %1433
        %1435 = vrot.lane.b32.xlu0 %v578, 32
        %v1436 = vpop.permute.xlu0 %1435
        %1437 = vrot.lane.b32.xlu0 %v583, 32
        %v1438 = vpop.permute.xlu0 %1437
        %1439 = vrot.lane.b32.xlu0 %v588, 32
        %v1440 = vpop.permute.xlu0 %1439
        %1441 = vrot.lane.b32.xlu0 %v593, 32
        %v1442 = vpop.permute.xlu0 %1441
        %1443 = vrot.lane.b32.xlu0 %v598, 32
        %v1444 = vpop.permute.xlu0 %1443
        %1445 = vrot.lane.b32.xlu0 %v603, 32
        %v1446 = vpop.permute.xlu0 %1445
        %1447 = vrot.lane.b32.xlu0 %v608, 32
        %v1448 = vpop.permute.xlu0 %1447
        %1449 = vrot.lane.b32.xlu0 %v613, 32
        %v1450 = vpop.permute.xlu0 %1449
        %1451 = vrot.lane.b32.xlu0 %v618, 32
        %v1452 = vpop.permute.xlu0 %1451
        %1453 = vrot.lane.b32.xlu0 %v623, 32
        %v1454 = vpop.permute.xlu0 %1453
        %v1471 = vadd.f32 %v1391, %v1424
        %v1472 = vadd.f32 %v1392, %v1426
        %v1473 = vadd.f32 %v1393, %v1428
        %v1474 = vadd.f32 %v1394, %v1430
        %v1475 = vadd.f32 %v1395, %v1432
        %v1476 = vadd.f32 %v1396, %v1434
        %v1477 = vadd.f32 %v1397, %v1436
        %v1478 = vadd.f32 %v1398, %v1438
        %v1479 = vadd.f32 %v1399, %v1440
        %v1480 = vadd.f32 %v1400, %v1442
        %v1481 = vadd.f32 %v1401, %v1444
        %v1482 = vadd.f32 %v1402, %v1446
        %v1483 = vadd.f32 %v1403, %v1448
        %v1484 = vadd.f32 %v1404, %v1450
        %v1485 = vadd.f32 %v1405, %v1452
        %v1486 = vadd.f32 %v1406, %v1454
        %1487 = vrot.lane.b32.xlu0 %v725, 32
        %v1488 = vpop.permute.xlu0 %1487
        %1489 = vrot.lane.b32.xlu0 %v730, 32
        %v1490 = vpop.permute.xlu0 %1489
        %1491 = vrot.lane.b32.xlu0 %v735, 32
        %v1492 = vpop.permute.xlu0 %1491
        %1493 = vrot.lane.b32.xlu0 %v740, 32
        %v1494 = vpop.permute.xlu0 %1493
        %1495 = vrot.lane.b32.xlu0 %v745, 32
        %v1496 = vpop.permute.xlu0 %1495
        %1497 = vrot.lane.b32.xlu0 %v750, 32
        %v1498 = vpop.permute.xlu0 %1497
        %1499 = vrot.lane.b32.xlu0 %v755, 32
        %v1500 = vpop.permute.xlu0 %1499
        %1501 = vrot.lane.b32.xlu0 %v760, 32
        %v1502 = vpop.permute.xlu0 %1501
        %1503 = vrot.lane.b32.xlu0 %v765, 32
        %v1504 = vpop.permute.xlu0 %1503
        %1505 = vrot.lane.b32.xlu0 %v770, 32
        %v1506 = vpop.permute.xlu0 %1505
        %1507 = vrot.lane.b32.xlu0 %v775, 32
        %v1508 = vpop.permute.xlu0 %1507
        %1509 = vrot.lane.b32.xlu0 %v780, 32
        %v1510 = vpop.permute.xlu0 %1509
        %1511 = vrot.lane.b32.xlu0 %v785, 32
        %v1512 = vpop.permute.xlu0 %1511
        %1513 = vrot.lane.b32.xlu0 %v790, 32
        %v1514 = vpop.permute.xlu0 %1513
        %1515 = vrot.lane.b32.xlu0 %v795, 32
        %v1516 = vpop.permute.xlu0 %1515
        %1517 = vrot.lane.b32.xlu0 %v800, 32
        %v1518 = vpop.permute.xlu0 %1517
        %v1535 = vadd.f32 %v1471, %v1488
        %v1536 = vadd.f32 %v1472, %v1490
        %v1537 = vadd.f32 %v1473, %v1492
        %v1538 = vadd.f32 %v1474, %v1494
        %v1539 = vadd.f32 %v1475, %v1496
        %v1540 = vadd.f32 %v1476, %v1498
        %v1541 = vadd.f32 %v1477, %v1500
        %v1542 = vadd.f32 %v1478, %v1502
        %v1543 = vadd.f32 %v1479, %v1504
        %v1544 = vadd.f32 %v1480, %v1506
        %v1545 = vadd.f32 %v1481, %v1508
        %v1546 = vadd.f32 %v1482, %v1510
        %v1547 = vadd.f32 %v1483, %v1512
        %v1548 = vadd.f32 %v1484, %v1514
        %v1549 = vadd.f32 %v1485, %v1516
        %v1550 = vadd.f32 %v1486, %v1518
        %1567 = vrot.lane.b32.xlu0 %v1535, 96
        %v1568 = vpop.permute.xlu0 %1567
        %1569 = vrot.lane.b32.xlu0 %v1536, 96
        %v1570 = vpop.permute.xlu0 %1569
        %1571 = vrot.lane.b32.xlu0 %v1537, 96
        %v1572 = vpop.permute.xlu0 %1571
        %1573 = vrot.lane.b32.xlu0 %v1538, 96
        %v1574 = vpop.permute.xlu0 %1573
        %1575 = vrot.lane.b32.xlu0 %v1539, 96
        %v1576 = vpop.permute.xlu0 %1575
        %1577 = vrot.lane.b32.xlu0 %v1540, 96
        %v1578 = vpop.permute.xlu0 %1577
        %1579 = vrot.lane.b32.xlu0 %v1541, 96
        %v1580 = vpop.permute.xlu0 %1579
        %1581 = vrot.lane.b32.xlu0 %v1542, 96
        %v1582 = vpop.permute.xlu0 %1581
        %1583 = vrot.lane.b32.xlu0 %v1543, 96
        %v1584 = vpop.permute.xlu0 %1583
        %1585 = vrot.lane.b32.xlu0 %v1544, 96
        %v1586 = vpop.permute.xlu0 %1585
        %1587 = vrot.lane.b32.xlu0 %v1545, 96
        %v1588 = vpop.permute.xlu0 %1587
        %1589 = vrot.lane.b32.xlu0 %v1546, 96
        %v1590 = vpop.permute.xlu0 %1589
        %1591 = vrot.lane.b32.xlu0 %v1547, 96
        %v1592 = vpop.permute.xlu0 %1591
        %1593 = vrot.lane.b32.xlu0 %v1548, 96
        %v1594 = vpop.permute.xlu0 %1593
        %1595 = vrot.lane.b32.xlu0 %v1549, 96
        %v1596 = vpop.permute.xlu0 %1595
        %1597 = vrot.lane.b32.xlu0 %v1550, 96
        %v1598 = vpop.permute.xlu0 %1597
        %vm1615 = vcmask 64512
        %1616 = vst.msk [vmem:[%s189] sm:$0xff] %vm1615, %v1568
        %1617 = vst.msk [vmem:[%s189 + $0x8] sm:$0xff] %vm1615, %v1570
        %1618 = vst.msk [vmem:[%s189 + $0x10] sm:$0xff] %vm1615, %v1572
        %1619 = vst.msk [vmem:[%s189 + $0x18] sm:$0xff] %vm1615, %v1574
        %1620 = vst.msk [vmem:[%s189 + $0x20] sm:$0xff] %vm1615, %v1576
        %1621 = vst.msk [vmem:[%s189 + $0x28] sm:$0xff] %vm1615, %v1578
        %1622 = vst.msk [vmem:[%s189 + $0x30] sm:$0xff] %vm1615, %v1580
        %1623 = vst.msk [vmem:[%s189 + $0x38] sm:$0xff] %vm1615, %v1582
        %1624 = vst.msk [vmem:[%s189 + $0x40] sm:$0xff] %vm1615, %v1584
        %1625 = vst.msk [vmem:[%s189 + $0x48] sm:$0xff] %vm1615, %v1586
        %1626 = vst.msk [vmem:[%s189 + $0x50] sm:$0xff] %vm1615, %v1588
        %1627 = vst.msk [vmem:[%s189 + $0x58] sm:$0xff] %vm1615, %v1590
        %1628 = vst.msk [vmem:[%s189 + $0x60] sm:$0xff] %vm1615, %v1592
        %1629 = vst.msk [vmem:[%s189 + $0x68] sm:$0xff] %vm1615, %v1594
        %1630 = vst.msk [vmem:[%s189 + $0x70] sm:$0xff] %vm1615, %v1596
        %1631 = vst.msk [vmem:[%s189 + $0x78] sm:$0xff] %vm1615, %v1598
        %s1632 = smul.u32 16, %s15
        %p1633 = scmp.lt.s32.totalorder %s1632, 31
        %s1634 = scalar_select %p1633, %s1632, 31
        %s1635 = smul.addr %s1634, 8
        %s1636 = scalar_lea.vmem %s3, %s1635
        // Predicated region
        $region37: #{tpu_custom_call.1} parent=31 // pred_check
          %p1637 = pneg %p101
        $region38: #{tpu_custom_call.1} parent=31 // pred_check_branch
          %1639 = sbr.rel (%p1637) target = $region40
        $region39: #{tpu_custom_call.1} parent=31 // pred_region
          %s1640 = smul.u32 16, %s15
        $region40: #{tpu_custom_call.1} parent=31 // pred_fallthru
          _
      $region32: #{tpu_custom_call.1} parent=5 // pred_fallthru
        _
      %p1641 = scmp.le.s32.totalorder 2, %s10
      // Predicated region
      $region41: #{tpu_custom_call.1} parent=5 // pred_check
        %p1642 = pneg %p1641
      $region42: #{tpu_custom_call.1} parent=5 // pred_check_branch
        %1644 = sbr.rel (%p1642) target = $region44
      $region43: #{tpu_custom_call.1} parent=5 // pred_region
        %s1645 = ssub.s32 %s10, 2
        // Predicated region
        $region45: #{tpu_custom_call.1} parent=43 // pred_check
          %p1646 = pneg %p107
        $region46: #{tpu_custom_call.1} parent=43 // pred_check_branch
          %1648 = sbr.rel (%p1646) target = $region48
        $region47: #{tpu_custom_call.1} parent=43 // pred_region
          %s1649 = smul.u32 16, %s16
          %p1650 = scmp.lt.s32.totalorder %s1649, 31
          %s1651 = scalar_select %p1650, %s1649, 31
          %s1652 = smul.addr %s1651, 8
          %s1653 = scalar_lea.vmem %s3, %s1652
        $region48: #{tpu_custom_call.1} parent=43 // pred_fallthru
          _
      $region44: #{tpu_custom_call.1} parent=5 // pred_fallthru
        _
    $region6: #{tpu_custom_call.1} parent=1 // loop_footer
      %s14 = sadd.s32 1, %s10
    $region7: #{tpu_custom_call.1} parent=1 // loop_footer_branch
      %9 = sbr.rel target = $region3
    $region8: #{tpu_custom_call.1} parent=1 // loop_exit
      _
    %1654 = vsyncpa [#allocation3], 1
    %s1655 = scalar_lea.sflag [#allocation3], 1
    %1656 = vsyncpa %s1655, 1

</llo_original>
